<compile_context>
chip_gen: v6e
topology: v6e:2x2x1
jax: 0.10.0
libtpu: 0.0.40
codegen_flags: <defaults>
</compile_context>

<pallas_src>
import functools

import jax
import jax.numpy as jnp
from jax import lax
from jax.experimental import pallas as pl
from jax.experimental.pallas import tpu as pltpu

# ----------------------------- small config ---------------------------------
HIDDEN = 128          # config.hidden_size
NUM_EXPERTS = 8       # config.num_experts
TOP_K = 2             # config.num_experts_per_tok
MOE_INTER = 128       # config.moe_intermediate_size


# ------------------------------ kernel --------------------------------------
def _moe_block_kernel(x_ref, wr_ref, wgu_ref, wd_ref, o_ref,
                      *, num_experts, top_k, inter):
    n = num_experts * inter

    xf = x_ref[...].astype(jnp.float32)                              # (T, H)
    x_bf = x_ref[...].astype(jnp.bfloat16)                           # (T, H)

    # ---- router: logits -> top-k -> renormalised routing weights ----------
    # f32 matmul (tiny) so top-k tie-breaking is bit-identical to the f32
    # reference; bf16 logits could flip near-tied expert selections.
    logits = jnp.dot(xf, wr_ref[...],
                     preferred_element_type=jnp.float32)             # (T, E)
    m = jnp.max(logits, axis=-1, keepdims=True)
    ex = jnp.exp(logits - m)   # softmax numerator; denom cancels in the renorm

    # top-k (K small) via unrolled first-occurrence argmax passes.
    # Tie-break picks the lowest expert index, matching lax.top_k.
    col = lax.broadcasted_iota(jnp.int32, ex.shape, 1)
    remaining = ex
    selected = jnp.zeros(ex.shape, dtype=jnp.bool_)
    for _ in range(top_k):
        vmax = jnp.max(remaining, axis=-1, keepdims=True)
        is_max = remaining >= vmax
        first = jnp.min(jnp.where(is_max, col, num_experts),
                        axis=-1, keepdims=True)
        pick = col == first
        selected = jnp.logical_or(selected, pick)
        remaining = jnp.where(pick, -1.0, remaining)   # ex > 0, so -1 == -inf

    topw = jnp.where(selected, ex, 0.0)
    # exact divide (not approx reciprocal): routing weights sum to 1 / token.
    rw = topw / jnp.sum(topw, axis=-1, keepdims=True)                # (T, E)

    # ---- all experts' gate/up in ONE MXU call ------------------------------
    # wgu layout: [all gates (E*I) | all ups (E*I)] along N.
    gu = jnp.dot(x_bf, wgu_ref[...],
                 preferred_element_type=jnp.float32)                 # (T, 2*E*I)
    g = gu[:, :n]
    u = gu[:, n:]
    h = (g * jax.nn.sigmoid(g)) * u                                  # SiluAndMul, (T, E*I)

    # ---- per-column routing scale: rw (T,E) -> (T, E*I) via tiny matmul ----
    # expand[e, c] = 1 iff column c belongs to expert e (block-diagonal ones).
    cidx = lax.broadcasted_iota(jnp.int32, (num_experts, n), 1)
    ridx = lax.broadcasted_iota(jnp.int32, (num_experts, n), 0)
    expand = jnp.logical_and(cidx >= ridx * inter,
                             cidx < (ridx + 1) * inter).astype(jnp.float32)
    scale = jnp.dot(rw, expand,
                    preferred_element_type=jnp.float32)              # (T, E*I)

    # ---- one K-concatenated down matmul -> weighted expert sum -------------
    h_scaled = (h * scale).astype(jnp.bfloat16)                      # (T, E*I)
    out = jnp.dot(h_scaled, wd_ref[...],
                  preferred_element_type=jnp.float32)                # (T, H)
    o_ref[...] = out.astype(o_ref.dtype)


# --------------------------- weight preparation -------------------------------
def prepare_moe_weights(params):
    """One-time re-layout of expert weights into the fused-GEMM form."""
    wgu = params["w_gate_up"]                 # (E, H, 2I), bf16
    wd = params["w_down"]                     # (E, I, H),  bf16
    num_experts, hidden, two_i = wgu.shape
    inter = two_i // 2

    gates = wgu[:, :, :inter]                 # (E, H, I)
    ups = wgu[:, :, inter:]                   # (E, H, I)
    # (H, E*I) with expert e occupying lane columns [e*I, (e+1)*I)
    gates_cat = jnp.transpose(gates, (1, 0, 2)).reshape(hidden, num_experts * inter)
    ups_cat = jnp.transpose(ups, (1, 0, 2)).reshape(hidden, num_experts * inter)
    w_gate_up_cat = jnp.concatenate([gates_cat, ups_cat], axis=1)    # (H, 2*E*I)
    w_down_cat = wd.reshape(num_experts * inter, hidden)             # (E*I, H)

    return {
        "w_router": params["w_router"],                              # (H, E), f32
        "w_gate_up_cat": w_gate_up_cat.astype(jnp.bfloat16),
        "w_down_cat": w_down_cat.astype(jnp.bfloat16),
    }


# ------------------------------ wrapper --------------------------------------
def qwen3_moe_sparse_moe_block(prepped, hidden_states, *, top_k=TOP_K):
    orig_shape = hidden_states.shape
    hidden = orig_shape[-1]
    x = hidden_states.reshape(-1, hidden)                            # (T, H)
    tokens = x.shape[0]
    num_experts = prepped["w_router"].shape[1]
    inter = prepped["w_down_cat"].shape[0] // num_experts

    # Token tile: big tokens shard across TensorCores ("parallel" axis);
    # tiny token counts just get padded up to the sublane multiple.
    if tokens >= 128:
        t_tile = 128
    else:
        t_tile = max(8, ((tokens + 7) // 8) * 8)
    t_pad = pl.cdiv(tokens, t_tile) * t_tile
    if t_pad != tokens:
        x = jnp.pad(x, ((0, t_pad - tokens), (0, 0)))

    kernel = functools.partial(_moe_block_kernel, num_experts=num_experts,
                               top_k=top_k, inter=inter)

    out = pl.pallas_call(
        kernel,
        grid=(t_pad // t_tile,),
        in_specs=[
            pl.BlockSpec((t_tile, hidden), lambda t: (t, 0)),                    # x tile
            pl.BlockSpec((hidden, num_experts), lambda t: (0, 0)),               # router W (resident)
            pl.BlockSpec((hidden, 2 * num_experts * inter), lambda t: (0, 0)),   # all gate|up (resident)
            pl.BlockSpec((num_experts * inter, hidden), lambda t: (0, 0)),       # all down (resident)
        ],
        out_specs=pl.BlockSpec((t_tile, hidden), lambda t: (t, 0)),
        out_shape=jax.ShapeDtypeStruct((t_pad, hidden), hidden_states.dtype),
        compiler_params=pltpu.CompilerParams(
            dimension_semantics=("parallel",)),   # token tiles are independent
    )(x, prepped["w_router"], prepped["w_gate_up_cat"], prepped["w_down_cat"])

    if t_pad != tokens:
        out = out[:tokens]
    return out.reshape(orig_shape)


# -------------------------- pure-JAX reference --------------------------------
def moe_reference(params, hidden_states):
    x = hidden_states.reshape(-1, hidden_states.shape[-1]).astype(jnp.float32)
    tokens = x.shape[0]
    wr = params["w_router"].astype(jnp.float32)
    wgu = params["w_gate_up"].astype(jnp.float32)
    wd = params["w_down"].astype(jnp.float32)
    num_experts, _, _ = wgu.shape
    inter = wd.shape[1]

    logits = x @ wr
    probs = jax.nn.softmax(logits, axis=-1)
    topv, topi = lax.top_k(probs, TOP_K)
    topv = topv / jnp.sum(topv, axis=-1, keepdims=True)       # norm_topk_prob
    rw = jnp.zeros((tokens, num_experts), jnp.float32).at[
        jnp.arange(tokens)[:, None], topi].set(topv)

    out = jnp.zeros_like(x)
    for e in range(num_experts):
        gu = x @ wgu[e]
        g, u = gu[:, :inter], gu[:, inter:]
        y = (g * jax.nn.sigmoid(g) * u) @ wd[e]
        out = out + rw[:, e:e + 1] * y
    return out.reshape(hidden_states.shape).astype(hidden_states.dtype)


# ------------------------------ params ----------------------------------------
def init_params(key):
    k1, k2, k3 = jax.random.split(key, 3)
    s = 0.05
    return {
        # (in, out) layout == PyTorch W.T ; router stays f32 (tiny), expert
        # weights stored bf16 for the MXU.
        "w_router": (s * jax.random.normal(k1, (HIDDEN, NUM_EXPERTS),
                                           jnp.float32)),
        # gate_proj and up_proj concatenated along the output dim: (E, H, 2*I)
        "w_gate_up": (s * jax.random.normal(
            k2, (NUM_EXPERTS, HIDDEN, 2 * MOE_INTER), jnp.float32)
        ).astype(jnp.bfloat16),
        "w_down": (s * jax.random.normal(
            k3, (NUM_EXPERTS, MOE_INTER, HIDDEN), jnp.float32)
        ).astype(jnp.bfloat16),
    }


# ------------------------------ main -------------------------------------------
if __name__ == "__main__":
    key = jax.random.PRNGKey(0)
    k_param, k_x = jax.random.split(key)
    params = init_params(k_param)
    prepped = jax.tree_util.tree_map(jnp.asarray, prepare_moe_weights(params))

    # (batch=2, seq=4, hidden=128) -> flattened to 8 tokens inside the block.
    hidden_states = jax.random.normal(k_x, (2, 4, HIDDEN), jnp.float32)

    fwd = jax.jit(qwen3_moe_sparse_moe_block)
    out = fwd(prepped, hidden_states)
    jax.block_until_ready(out)

    ref = moe_reference(params, hidden_states)
    assert out.shape == hidden_states.shape
    assert bool(jnp.all(jnp.isfinite(out)))
    max_err = float(jnp.max(jnp.abs(out.astype(jnp.float32)
                                    - ref.astype(jnp.float32))))
    assert max_err < 2e-2, f"max abs error vs reference too large: {max_err}"
    print("KERNEL_OK")
</pallas_src>

<mosaic_0001>
module attributes {stable_mosaic.version = 11 : i64} {
  func.func @_moe_block_kernel(%arg0: i32, %arg1: memref<8x128xf32, #tpu.memory_space<vmem>>, %arg2: memref<128x8xf32, #tpu.memory_space<vmem>>, %arg3: memref<128x2048xbf16, #tpu.memory_space<vmem>>, %arg4: memref<1024x128xbf16, #tpu.memory_space<vmem>>, %arg5: memref<8x128xf32, #tpu.memory_space<vmem>>) attributes {dimension_semantics = [#tpu.dimension_semantics<parallel>], iteration_bounds = array<i64: 1>, scalar_prefetch = 0 : i64, scratch_operands = 0 : i64, tpu.core_type = #tpu.core_type<tc>, window_params = [{transform_indices = @transform_0, window_bounds = array<i64: 8, 128>}, {pipeline_mode = #tpu.pipeline_mode<synchronous>, transform_indices = @transform_1, window_bounds = array<i64: 128, 8>}, {pipeline_mode = #tpu.pipeline_mode<synchronous>, transform_indices = @transform_2, window_bounds = array<i64: 128, 2048>}, {pipeline_mode = #tpu.pipeline_mode<synchronous>, transform_indices = @transform_3, window_bounds = array<i64: 1024, 128>}, {transform_indices = @transform_4, window_bounds = array<i64: 8, 128>}]} {
    %c0 = arith.constant 0 : index
    %c0_0 = arith.constant 0 : index
    %0 = vector.load %arg1[%c0, %c0_0] : memref<8x128xf32, #tpu.memory_space<vmem>>, vector<8x128xf32>
    %c0_1 = arith.constant 0 : index
    %c0_2 = arith.constant 0 : index
    %1 = vector.load %arg1[%c0_1, %c0_2] : memref<8x128xf32, #tpu.memory_space<vmem>>, vector<8x128xf32>
    %2 = arith.truncf %1 : vector<8x128xf32> to vector<8x128xbf16>
    %c0_3 = arith.constant 0 : index
    %c0_4 = arith.constant 0 : index
    %3 = vector.load %arg2[%c0_3, %c0_4] : memref<128x8xf32, #tpu.memory_space<vmem>>, vector<128x8xf32>
    %cst = arith.constant dense<0.000000e+00> : vector<8x8xf32>
    %4 = tpu.matmul %0, %3, %cst {dimension_numbers = #tpu.dot_dimension_numbers<[1], [0], [0], [1], [0, 0, 1, 1], [], []>} : vector<8x128xf32>, vector<128x8xf32>, vector<8x8xf32> -> vector<8x8xf32>
    %cst_5 = arith.constant dense<0xFF800000> : vector<8xf32>
    %5 = vector.multi_reduction <maximumf>, %4, %cst_5 [1] : vector<8x8xf32> to vector<8xf32>
    %6 = vector.shape_cast %5 : vector<8xf32> to vector<8x1xf32>
    %7 = vector.broadcast %6 : vector<8x1xf32> to vector<8x8xf32>
    %8 = arith.subf %4, %7 : vector<8x8xf32>
    %9 = math.exp %8 : vector<8x8xf32>
    %10 = tpu.iota {dimensions = array<i32: 1>} : vector<8x8xi32>
    %false = arith.constant false
    %11 = vector.broadcast %false : i1 to vector<8x8xi1>
    %cst_6 = arith.constant dense<0xFF800000> : vector<8xf32>
    %12 = vector.multi_reduction <maximumf>, %9, %cst_6 [1] : vector<8x8xf32> to vector<8xf32>
    %13 = vector.shape_cast %12 : vector<8xf32> to vector<8x1xf32>
    %14 = vector.broadcast %13 : vector<8x1xf32> to vector<8x8xf32>
    %15 = arith.cmpf oge, %9, %14 : vector<8x8xf32>
    %c8_i32 = arith.constant 8 : i32
    %16 = vector.broadcast %c8_i32 : i32 to vector<8x8xi32>
    %17 = arith.select %15, %10, %16 : vector<8x8xi1>, vector<8x8xi32>
    %cst_7 = arith.constant dense<2147483647> : vector<8xi32>
    %18 = vector.multi_reduction <minsi>, %17, %cst_7 [1] : vector<8x8xi32> to vector<8xi32>
    %19 = vector.shape_cast %18 : vector<8xi32> to vector<8x1xi32>
    %20 = vector.broadcast %19 : vector<8x1xi32> to vector<8x8xi32>
    %21 = arith.cmpi eq, %10, %20 : vector<8x8xi32>
    %22 = arith.ori %11, %21 : vector<8x8xi1>
    %cst_8 = arith.constant -1.000000e+00 : f32
    %23 = vector.broadcast %cst_8 : f32 to vector<8x8xf32>
    %24 = arith.select %21, %23, %9 : vector<8x8xi1>, vector<8x8xf32>
    %cst_9 = arith.constant dense<0xFF800000> : vector<8xf32>
    %25 = vector.multi_reduction <maximumf>, %24, %cst_9 [1] : vector<8x8xf32> to vector<8xf32>
    %26 = vector.shape_cast %25 : vector<8xf32> to vector<8x1xf32>
    %27 = vector.broadcast %26 : vector<8x1xf32> to vector<8x8xf32>
    %28 = arith.cmpf oge, %24, %27 : vector<8x8xf32>
    %c8_i32_10 = arith.constant 8 : i32
    %29 = vector.broadcast %c8_i32_10 : i32 to vector<8x8xi32>
    %30 = arith.select %28, %10, %29 : vector<8x8xi1>, vector<8x8xi32>
    %cst_11 = arith.constant dense<2147483647> : vector<8xi32>
    %31 = vector.multi_reduction <minsi>, %30, %cst_11 [1] : vector<8x8xi32> to vector<8xi32>
    %32 = vector.shape_cast %31 : vector<8xi32> to vector<8x1xi32>
    %33 = vector.broadcast %32 : vector<8x1xi32> to vector<8x8xi32>
    %34 = arith.cmpi eq, %10, %33 : vector<8x8xi32>
    %35 = arith.ori %22, %34 : vector<8x8xi1>
    %cst_12 = arith.constant 0.000000e+00 : f32
    %36 = vector.broadcast %cst_12 : f32 to vector<8x8xf32>
    %37 = arith.select %35, %9, %36 : vector<8x8xi1>, vector<8x8xf32>
    %cst_13 = arith.constant dense<0.000000e+00> : vector<8xf32>
    %38 = vector.multi_reduction <add>, %37, %cst_13 [1] : vector<8x8xf32> to vector<8xf32>
    %39 = vector.shape_cast %38 : vector<8xf32> to vector<8x1xf32>
    %40 = vector.broadcast %39 : vector<8x1xf32> to vector<8x8xf32>
    %41 = arith.divf %37, %40 : vector<8x8xf32>
    %c0_14 = arith.constant 0 : index
    %c0_15 = arith.constant 0 : index
    %42 = vector.load %arg3[%c0_14, %c0_15] : memref<128x2048xbf16, #tpu.memory_space<vmem>>, vector<128x2048xbf16>
    %cst_16 = arith.constant dense<0.000000e+00> : vector<8x2048xf32>
    %43 = tpu.matmul %2, %42, %cst_16 {dimension_numbers = #tpu.dot_dimension_numbers<[1], [0], [0], [1], [0, 0, 1, 1], [], []>} : vector<8x128xbf16>, vector<128x2048xbf16>, vector<8x2048xf32> -> vector<8x2048xf32>
    %44 = vector.extract_strided_slice %43 {offsets = [0, 0], sizes = [8, 1024], strides = [1, 1]} : vector<8x2048xf32> to vector<8x1024xf32>
    %45 = vector.extract_strided_slice %43 {offsets = [0, 1024], sizes = [8, 1024], strides = [1, 1]} : vector<8x2048xf32> to vector<8x1024xf32>
    %46 = arith.negf %44 : vector<8x1024xf32>
    %47 = math.exp %46 : vector<8x1024xf32>
    %cst_17 = arith.constant 1.000000e+00 : f32
    %48 = vector.broadcast %cst_17 : f32 to vector<8x1024xf32>
    %49 = arith.addf %48, %47 : vector<8x1024xf32>
    %50 = arith.divf %48, %49 : vector<8x1024xf32>
    %51 = arith.mulf %44, %50 : vector<8x1024xf32>
    %52 = arith.mulf %51, %45 : vector<8x1024xf32>
    %53 = tpu.iota {dimensions = array<i32: 1>} : vector<8x1024xi32>
    %54 = tpu.iota {dimensions = array<i32: 0>} : vector<8x1024xi32>
    %c128_i32 = arith.constant 128 : i32
    %55 = vector.broadcast %c128_i32 : i32 to vector<8x1024xi32>
    %56 = arith.muli %54, %55 : vector<8x1024xi32>
    %57 = arith.cmpi sge, %53, %56 : vector<8x1024xi32>
    %c1_i32 = arith.constant 1 : i32
    %58 = vector.broadcast %c1_i32 : i32 to vector<8x1024xi32>
    %59 = arith.addi %54, %58 : vector<8x1024xi32>
    %c128_i32_18 = arith.constant 128 : i32
    %60 = vector.broadcast %c128_i32_18 : i32 to vector<8x1024xi32>
    %61 = arith.muli %59, %60 : vector<8x1024xi32>
    %62 = arith.cmpi slt, %53, %61 : vector<8x1024xi32>
    %63 = arith.andi %57, %62 : vector<8x1024xi1>
    %64 = arith.extui %63 : vector<8x1024xi1> to vector<8x1024xi32>
    %65 = arith.sitofp %64 : vector<8x1024xi32> to vector<8x1024xf32>
    %cst_19 = arith.constant dense<0.000000e+00> : vector<8x1024xf32>
    %66 = tpu.matmul %41, %65, %cst_19 {dimension_numbers = #tpu.dot_dimension_numbers<[1], [0], [0], [1], [0, 0, 1, 1], [], []>} : vector<8x8xf32>, vector<8x1024xf32>, vector<8x1024xf32> -> vector<8x1024xf32>
    %67 = arith.mulf %52, %66 : vector<8x1024xf32>
    %68 = arith.truncf %67 : vector<8x1024xf32> to vector<8x1024xbf16>
    %c0_20 = arith.constant 0 : index
    %c0_21 = arith.constant 0 : index
    %69 = vector.load %arg4[%c0_20, %c0_21] : memref<1024x128xbf16, #tpu.memory_space<vmem>>, vector<1024x128xbf16>
    %cst_22 = arith.constant dense<0.000000e+00> : vector<8x128xf32>
    %70 = tpu.matmul %68, %69, %cst_22 {dimension_numbers = #tpu.dot_dimension_numbers<[1], [0], [0], [1], [0, 0, 1, 1], [], []>} : vector<8x1024xbf16>, vector<1024x128xbf16>, vector<8x128xf32> -> vector<8x128xf32>
    %c0_23 = arith.constant 0 : index
    %c0_24 = arith.constant 0 : index
    %71 = vector.load %arg5[%c0_23, %c0_24] : memref<8x128xf32, #tpu.memory_space<vmem>>, vector<8x128xf32>
    tpu.vector_store %arg5[%c0_23, %c0_24], %70 {strides = array<i32>} : memref<8x128xf32, #tpu.memory_space<vmem>>, vector<8x128xf32>,
    return
  }
  func.func @transform_0(%arg0: i32) -> (i32, i32) {
    %c0_i32 = arith.constant 0 : i32
    %c0_i32_0 = arith.constant 0 : i32
    return %arg0, %c0_i32 : i32, i32
  }
  func.func @transform_1(%arg0: i32) -> (i32, i32) {
    %c0_i32 = arith.constant 0 : i32
    %c0_i32_0 = arith.constant 0 : i32
    %c0_i32_1 = arith.constant 0 : i32
    return %c0_i32, %c0_i32_0 : i32, i32
  }
  func.func @transform_2(%arg0: i32) -> (i32, i32) {
    %c0_i32 = arith.constant 0 : i32
    %c0_i32_0 = arith.constant 0 : i32
    %c0_i32_1 = arith.constant 0 : i32
    return %c0_i32, %c0_i32_0 : i32, i32
  }
  func.func @transform_3(%arg0: i32) -> (i32, i32) {
    %c0_i32 = arith.constant 0 : i32
    %c0_i32_0 = arith.constant 0 : i32
    %c0_i32_1 = arith.constant 0 : i32
    return %c0_i32, %c0_i32_0 : i32, i32
  }
  func.func @transform_4(%arg0: i32) -> (i32, i32) {
    %c0_i32 = arith.constant 0 : i32
    %c0_i32_0 = arith.constant 0 : i32
    return %arg0, %c0_i32 : i32, i32
  }
}

</mosaic_0001>

<llo_original>
// kernel: qwen3_moe_sparse_moe_block.1
$region0: #{qwen3_moe_sparse_moe_block.1}
  #allocation0 [shape = 'u32[]', space=smem, size = 0x4, offset = 0x4, fixed_abs, tag = 'smem constant byte address 0x4 - core index']
  #allocation1 [shape = 'u32[144,128]{1,0:T(1,128)}', space=vmem, size = 0x12000, scoped, tag = 'internal scratch']
  %s0 = inlined_call_operand.vmem [shape: f32[8,128], index: 0, kind: input, shape index: {}]
  %s1 = inlined_call_operand.vmem [shape: f32[128,8], index: 1, kind: input, shape index: {}]
  %s2 = inlined_call_operand.hbm [shape: bf16[128,2048], index: 2, kind: input, shape index: {}]
  %s3 = inlined_call_operand.hbm [shape: bf16[1024,128], index: 3, kind: input, shape index: {}]
  %s4 = inlined_call_operand.hbm [shape: f32[8,128], index: 4, kind: output, shape index: {}]
  %s5 = sld [smem:[#allocation0]]
  $region34: #{qwen3_moe_sparse_moe_block.1} parent=0
    _
  %s7 = ssub.s32 1, %s5
  %s8 = scalar_select 0, %s7, %s5
  $region1: #{qwen3_moe_sparse_moe_block.1} parent=0
    #allocation2 [shape = 'u8[524288]{0}', space=vmem, size = 0x80000, scoped, tag = 'input window, operand 2, single buffered']
    #allocation3 [shape = 's32[1]{0}', space=sflag, size = 0x4, scoped, tag = 'scoped memory for qwen3_moe_sparse_moe_block.1']
    #allocation4 [shape = 's32[1]{0}', space=sflag, size = 0x4, scoped, tag = 'scoped memory for qwen3_moe_sparse_moe_block.1']
    #allocation5 [shape = 'u8[262144]{0}', space=vmem, size = 0x40000, scoped, tag = 'input window, operand 3, single buffered']
    #allocation6 [shape = 's32[1]{0}', space=sflag, size = 0x4, scoped, tag = 'scoped memory for qwen3_moe_sparse_moe_block.1']
    #allocation7 [shape = 'u8[4096]{0}', space=vmem, size = 0x1000, scoped, tag = 'output window, operand 0, single buffered']
    %9 = vsyncpa [#allocation3], 0
    %10 = vsyncpa [#allocation6], 0
    %11 = vsyncpa [#allocation4], 0
    // Predicated region
    $region2: #{qwen3_moe_sparse_moe_block.1} parent=1 // pred_check
      _
    $region3: #{qwen3_moe_sparse_moe_block.1} parent=1 // pred_check_branch
      %13 = sbr.rel (0) target = $region5
    $region4: #{qwen3_moe_sparse_moe_block.1} parent=1 // pred_region
      _
    $region5: #{qwen3_moe_sparse_moe_block.1} parent=1 // pred_fallthru
      _
    // Predicated region
    $region6: #{qwen3_moe_sparse_moe_block.1} parent=1 // pred_check
      _
    $region7: #{qwen3_moe_sparse_moe_block.1} parent=1 // pred_check_branch
      %15 = sbr.rel (0) target = $region9
    $region8: #{qwen3_moe_sparse_moe_block.1} parent=1 // pred_region
      _
    $region9: #{qwen3_moe_sparse_moe_block.1} parent=1 // pred_fallthru
      _
    // Predicated region
    $region10: #{qwen3_moe_sparse_moe_block.1} parent=1 // pred_check
      _
    $region11: #{qwen3_moe_sparse_moe_block.1} parent=1 // pred_check_branch
      %17 = sbr.rel (0) target = $region13
    $region12: #{qwen3_moe_sparse_moe_block.1} parent=1 // pred_region
      %s19 = ssub.s32 16384, 16384
      %20 = vsyncadd [#allocation3], %s19
      %s21 = sshll.u32 [#allocation2], 4
      %s22 = int_to_ptr.vmem [resolvable:$true] %s21
      %27 = dma.hbm_to_vmem [thread:$0]  %s2, 16384, %s22, [#allocation3], 1024, 1024, 64
    $region13: #{qwen3_moe_sparse_moe_block.1} parent=1 // pred_fallthru
      _
    // Predicated region
    $region14: #{qwen3_moe_sparse_moe_block.1} parent=1 // pred_check
      _
    $region15: #{qwen3_moe_sparse_moe_block.1} parent=1 // pred_check_branch
      %29 = sbr.rel (0) target = $region17
    $region16: #{qwen3_moe_sparse_moe_block.1} parent=1 // pred_region
      %s31 = ssub.s32 8192, 8192
      %32 = vsyncadd [#allocation6], %s31
      %s33 = sshll.u32 [#allocation5], 4
      %s34 = int_to_ptr.vmem [resolvable:$true] %s33
      %39 = dma.hbm_to_vmem [thread:$0]  %s3, 8192, %s34, [#allocation6], 64, 64, 4
    $region17: #{qwen3_moe_sparse_moe_block.1} parent=1 // pred_fallthru
      _
    // Predicated region
    $region18: #{qwen3_moe_sparse_moe_block.1} parent=1 // pred_check
      _
    $region19: #{qwen3_moe_sparse_moe_block.1} parent=1 // pred_check_branch
      %41 = sbr.rel (0) target = $region21
    $region20: #{qwen3_moe_sparse_moe_block.1} parent=1 // pred_region
      %42 = dma.done [#allocation3], 16384
    $region21: #{qwen3_moe_sparse_moe_block.1} parent=1 // pred_fallthru
      _
    // Predicated region
    $region22: #{qwen3_moe_sparse_moe_block.1} parent=1 // pred_check
      _
    $region23: #{qwen3_moe_sparse_moe_block.1} parent=1 // pred_check_branch
      %44 = sbr.rel (0) target = $region25
    $region24: #{qwen3_moe_sparse_moe_block.1} parent=1 // pred_region
      %45 = dma.done [#allocation6], 8192
    $region25: #{qwen3_moe_sparse_moe_block.1} parent=1 // pred_fallthru
      _
    %v47 = vld [vmem:[%s0] sm:$0xff]
    %v48 = vpack.c.bf16 %v47, %v47
    %v49 = vld [vmem:[%s1] sm:$0xff]
    %v50 = vld [vmem:[%s1 + $0x8] sm:$0xff]
    %v51 = vld [vmem:[%s1 + $0x10] sm:$0xff]
    %v52 = vld [vmem:[%s1 + $0x18] sm:$0xff]
    %v53 = vld [vmem:[%s1 + $0x20] sm:$0xff]
    %v54 = vld [vmem:[%s1 + $0x28] sm:$0xff]
    %v55 = vld [vmem:[%s1 + $0x30] sm:$0xff]
    %v56 = vld [vmem:[%s1 + $0x38] sm:$0xff]
    %v57 = vld [vmem:[%s1 + $0x40] sm:$0xff]
    %v58 = vld [vmem:[%s1 + $0x48] sm:$0xff]
    %v59 = vld [vmem:[%s1 + $0x50] sm:$0xff]
    %v60 = vld [vmem:[%s1 + $0x58] sm:$0xff]
    %v61 = vld [vmem:[%s1 + $0x60] sm:$0xff]
    %v62 = vld [vmem:[%s1 + $0x68] sm:$0xff]
    %v63 = vld [vmem:[%s1 + $0x70] sm:$0xff]
    %v64 = vld [vmem:[%s1 + $0x78] sm:$0xff]
    %65 = vmatprep.subr.mxu0 0.0
    %66 = vmatpush1.msra.mxu0 %v64
    %67 = vmatprep.subr.mxu0 0.0
    %68 = vmatpush1.msra.mxu0 %v63
    %69 = vmatprep.subr.mxu0 0.0
    %70 = vmatpush1.msra.mxu0 %v62
    %71 = vmatprep.subr.mxu0 0.0
    %72 = vmatpush1.msra.mxu0 %v61
    %73 = vmatprep.subr.mxu0 0.0
    %74 = vmatpush1.msra.mxu0 %v60
    %75 = vmatprep.subr.mxu0 0.0
    %76 = vmatpush1.msra.mxu0 %v59
    %77 = vmatprep.subr.mxu0 0.0
    %78 = vmatpush1.msra.mxu0 %v58
    %79 = vmatprep.subr.mxu0 0.0
    %80 = vmatpush1.msra.mxu0 %v57
    %81 = vmatprep.subr.mxu0 0.0
    %82 = vmatpush1.msra.mxu0 %v56
    %83 = vmatprep.subr.mxu0 0.0
    %84 = vmatpush1.msra.mxu0 %v55
    %85 = vmatprep.subr.mxu0 0.0
    %86 = vmatpush1.msra.mxu0 %v54
    %87 = vmatprep.subr.mxu0 0.0
    %88 = vmatpush1.msra.mxu0 %v53
    %89 = vmatprep.subr.mxu0 0.0
    %90 = vmatpush1.msra.mxu0 %v52
    %91 = vmatprep.subr.mxu0 0.0
    %92 = vmatpush1.msra.mxu0 %v51
    %93 = vmatprep.subr.mxu0 0.0
    %94 = vmatpush1.msra.mxu0 %v50
    %95 = vmatprep.subr.mxu0 0.0
    %96 = vmatpush1.msra.mxu0 %v49
    %97 = vmatprep.subr.mxu0 0.0
    %98 = vmatpush2.msra.mxu0 0.0
    %99 = vmatprep.subr.mxu0 0.0
    %100 = vmatpush2.msra.mxu0 0.0
    %101 = vmatprep.subr.mxu0 0.0
    %102 = vmatpush2.msra.mxu0 0.0
    %103 = vmatprep.subr.mxu0 0.0
    %104 = vmatpush2.msra.mxu0 0.0
    %105 = vmatprep.subr.mxu0 0.0
    %106 = vmatpush2.msra.mxu0 0.0
    %107 = vmatprep.subr.mxu0 0.0
    %108 = vmatpush2.msra.mxu0 0.0
    %109 = vmatprep.subr.mxu0 0.0
    %110 = vmatpush2.msra.mxu0 0.0
    %111 = vmatprep.subr.mxu0 0.0
    %112 = vmatpush2.msra.mxu0 0.0
    %113 = vmatprep.subr.mxu0 0.0
    %114 = vmatpush2.msra.mxu0 0.0
    %115 = vmatprep.subr.mxu0 0.0
    %116 = vmatpush2.msra.mxu0 0.0
    %117 = vmatprep.subr.mxu0 0.0
    %118 = vmatpush2.msra.mxu0 0.0
    %119 = vmatprep.subr.mxu0 0.0
    %120 = vmatpush2.msra.mxu0 0.0
    %121 = vmatprep.subr.mxu0 0.0
    %122 = vmatpush2.msra.mxu0 0.0
    %123 = vmatprep.subr.mxu0 0.0
    %124 = vmatpush2.msra.mxu0 0.0
    %125 = vmatprep.subr.mxu0 0.0
    %126 = vmatpush2.msra.mxu0 0.0
    %127 = vmatprep.subr.mxu0 0.0
    %128 = vmatpush2.msra.mxu0 0.0
    %129 = vmatprep.mubr.f32.mxu0 0.0
    %130 = vmatmul.mubr.f32.gmra.mxu0 %v47
    %v131 = vpop.f32.mrf.mxu0
    %v132 = vadd.f32 0.0, %v131
    %v133 = vpop.f32.mrf.mxu0
    %134 = vdwg.mxu0
    %vm135 = vcmask 64512
    %v136 = vsel %vm135, %v132, -inf
    %137 = vmax.xlane.f32.xlu0 %v136
    %v138 = vpop.xlane.xlu0 %137
    %v139 = vsub.f32 %v132, %v138
    %v140 = vmul.f32 %v139, 1.442695
    %v141 = vpow.pop %v140
    %v142 = vlaneseq
    %v143 = vand.u32 %v142, 127
    %v144 = vsel %vm135, %v141, -inf
    %145 = vmax.xlane.f32.xlu0 %v144
    %v146 = vpop.xlane.xlu0 %145
    %vm147 = vcmp.ge.f32.partialorder %v141, %v146
    %v148 = vsel %vm147, %v143, 8
    %v149 = vsel %vm135, %v148, 2147483647
    %v150 = vand.u32 %v149, 65535
    %v151 = vshra.s32 %v149, 16
    %v152 = vcvt.s32.f32 %v150
    %v153 = vcvt.s32.f32 %v151
    %154 = vmin.xlane.f32.xlu0 %v153
    %v155 = vpop.xlane.xlu0 %154
    %vm156 = vcmp.eq.f32.partialorder %v153, %v155
    %v157 = vsel %vm156, %v152, inf
    %158 = vmin.xlane.f32.xlu0 %v157
    %v159 = vpop.xlane.xlu0 %158
    %v160 = vcvt.f32.s32 %v159
    %v161 = vcvt.f32.s32 %v155
    %v162 = vshll.u32 %v161, 16
    %v163 = vadd.s32 %v162, %v160
    %vm164 = vcmp.eq.s32.totalorder %v143, %v163
    %v165 = vsel %vm164, -1.0, %v141
    %v166 = vsel %vm135, %v165, -inf
    %167 = vmax.xlane.f32.xlu0 %v166
    %v168 = vpop.xlane.xlu0 %167
    %vm169 = vcmp.ge.f32.partialorder %v165, %v168
    %v170 = vsel %vm169, %v143, 8
    %v171 = vsel %vm135, %v170, 2147483647
    %v172 = vand.u32 %v171, 65535
    %v173 = vshra.s32 %v171, 16
    %v174 = vcvt.s32.f32 %v172
    %v175 = vcvt.s32.f32 %v173
    %176 = vmin.xlane.f32.xlu0 %v175
    %v177 = vpop.xlane.xlu0 %176
    %vm178 = vcmp.eq.f32.partialorder %v175, %v177
    %v179 = vsel %vm178, %v174, inf
    %180 = vmin.xlane.f32.xlu0 %v179
    %v181 = vpop.xlane.xlu0 %180
    %v182 = vcvt.f32.s32 %v181
    %v183 = vcvt.f32.s32 %v177
    %v184 = vshll.u32 %v183, 16
    %v185 = vadd.s32 %v184, %v182
    %vm186 = vcmp.eq.s32.totalorder %v143, %v185
    %vm187 = vmor %vm164, %vm186
    %v188 = vsel %vm187, %v141, 0.0
    %v189 = vsel %vm135, %v188, 0.0
    %190 = vadd.xlane.f32.xlu0 %v189
    %v191 = vpop.xlane.xlu0 %190
    %v192 = vrcp.pop %v191
    %v193 = vmul.f32 %v188, %v192
    %v194 = vld [vmem:[#allocation2] sm:$0xff]
    %v195 = vld [vmem:[#allocation2 + $0x8] sm:$0xff]
    %v196 = vld [vmem:[#allocation2 + $0x10] sm:$0xff]
    %v197 = vld [vmem:[#allocation2 + $0x18] sm:$0xff]
    %v198 = vld [vmem:[#allocation2 + $0x20] sm:$0xff]
    %v199 = vld [vmem:[#allocation2 + $0x28] sm:$0xff]
    %v200 = vld [vmem:[#allocation2 + $0x30] sm:$0xff]
    %v201 = vld [vmem:[#allocation2 + $0x38] sm:$0xff]
    %v202 = vld [vmem:[#allocation2 + $0x40] sm:$0xff]
    %v203 = vld [vmem:[#allocation2 + $0x48] sm:$0xff]
    %v204 = vld [vmem:[#allocation2 + $0x50] sm:$0xff]
    %v205 = vld [vmem:[#allocation2 + $0x58] sm:$0xff]
    %v206 = vld [vmem:[#allocation2 + $0x60] sm:$0xff]
    %v207 = vld [vmem:[#allocation2 + $0x68] sm:$0xff]
    %v208 = vld [vmem:[#allocation2 + $0x70] sm:$0xff]
    %v209 = vld [vmem:[#allocation2 + $0x78] sm:$0xff]
    %v210 = vld [vmem:[#allocation2 + $0x80] sm:$0xff]
    %v211 = vld [vmem:[#allocation2 + $0x88] sm:$0xff]
    %v212 = vld [vmem:[#allocation2 + $0x90] sm:$0xff]
    %v213 = vld [vmem:[#allocation2 + $0x98] sm:$0xff]
    %v214 = vld [vmem:[#allocation2 + $0xa0] sm:$0xff]
    %v215 = vld [vmem:[#allocation2 + $0xa8] sm:$0xff]
    %v216 = vld [vmem:[#allocation2 + $0xb0] sm:$0xff]
    %v217 = vld [vmem:[#allocation2 + $0xb8] sm:$0xff]
    %v218 = vld [vmem:[#allocation2 + $0xc0] sm:$0xff]
    %v219 = vld [vmem:[#allocation2 + $0xc8] sm:$0xff]
    %v220 = vld [vmem:[#allocation2 + $0xd0] sm:$0xff]
    %v221 = vld [vmem:[#allocation2 + $0xd8] sm:$0xff]
    %v222 = vld [vmem:[#allocation2 + $0xe0] sm:$0xff]
    %v223 = vld [vmem:[#allocation2 + $0xe8] sm:$0xff]
    %v224 = vld [vmem:[#allocation2 + $0xf0] sm:$0xff]
    %v225 = vld [vmem:[#allocation2 + $0xf8] sm:$0xff]
    %v226 = vld [vmem:[#allocation2 + $0x100] sm:$0xff]
    %v227 = vld [vmem:[#allocation2 + $0x108] sm:$0xff]
    %v228 = vld [vmem:[#allocation2 + $0x110] sm:$0xff]
    %v229 = vld [vmem:[#allocation2 + $0x118] sm:$0xff]
    %v230 = vld [vmem:[#allocation2 + $0x120] sm:$0xff]
    %v231 = vld [vmem:[#allocation2 + $0x128] sm:$0xff]
    %v232 = vld [vmem:[#allocation2 + $0x130] sm:$0xff]
    %v233 = vld [vmem:[#allocation2 + $0x138] sm:$0xff]
    %v234 = vld [vmem:[#allocation2 + $0x140] sm:$0xff]
    %v235 = vld [vmem:[#allocation2 + $0x148] sm:$0xff]
    %v236 = vld [vmem:[#allocation2 + $0x150] sm:$0xff]
    %v237 = vld [vmem:[#allocation2 + $0x158] sm:$0xff]
    %v238 = vld [vmem:[#allocation2 + $0x160] sm:$0xff]
    %v239 = vld [vmem:[#allocation2 + $0x168] sm:$0xff]
    %v240 = vld [vmem:[#allocation2 + $0x170] sm:$0xff]
    %v241 = vld [vmem:[#allocation2 + $0x178] sm:$0xff]
    %v242 = vld [vmem:[#allocation2 + $0x180] sm:$0xff]
    %v243 = vld [vmem:[#allocation2 + $0x188] sm:$0xff]
    %v244 = vld [vmem:[#allocation2 + $0x190] sm:$0xff]
    %v245 = vld [vmem:[#allocation2 + $0x198] sm:$0xff]
    %v246 = vld [vmem:[#allocation2 + $0x1a0] sm:$0xff]
    %v247 = vld [vmem:[#allocation2 + $0x1a8] sm:$0xff]
    %v248 = vld [vmem:[#allocation2 + $0x1b0] sm:$0xff]
    %v249 = vld [vmem:[#allocation2 + $0x1b8] sm:$0xff]
    %v250 = vld [vmem:[#allocation2 + $0x1c0] sm:$0xff]
    %v251 = vld [vmem:[#allocation2 + $0x1c8] sm:$0xff]
    %v252 = vld [vmem:[#allocation2 + $0x1d0] sm:$0xff]
    %v253 = vld [vmem:[#allocation2 + $0x1d8] sm:$0xff]
    %v254 = vld [vmem:[#allocation2 + $0x1e0] sm:$0xff]
    %v255 = vld [vmem:[#allocation2 + $0x1e8] sm:$0xff]
    %v256 = vld [vmem:[#allocation2 + $0x1f0] sm:$0xff]
    %v257 = vld [vmem:[#allocation2 + $0x1f8] sm:$0xff]
    %v258 = vld [vmem:[#allocation2 + $0x200] sm:$0xff]
    %v259 = vld [vmem:[#allocation2 + $0x208] sm:$0xff]
    %v260 = vld [vmem:[#allocation2 + $0x210] sm:$0xff]
    %v261 = vld [vmem:[#allocation2 + $0x218] sm:$0xff]
    %v262 = vld [vmem:[#allocation2 + $0x220] sm:$0xff]
    %v263 = vld [vmem:[#allocation2 + $0x228] sm:$0xff]
    %v264 = vld [vmem:[#allocation2 + $0x230] sm:$0xff]
    %v265 = vld [vmem:[#allocation2 + $0x238] sm:$0xff]
    %v266 = vld [vmem:[#allocation2 + $0x240] sm:$0xff]
    %v267 = vld [vmem:[#allocation2 + $0x248] sm:$0xff]
    %v268 = vld [vmem:[#allocation2 + $0x250] sm:$0xff]
    %v269 = vld [vmem:[#allocation2 + $0x258] sm:$0xff]
    %v270 = vld [vmem:[#allocation2 + $0x260] sm:$0xff]
    %v271 = vld [vmem:[#allocation2 + $0x268] sm:$0xff]
    %v272 = vld [vmem:[#allocation2 + $0x270] sm:$0xff]
    %v273 = vld [vmem:[#allocation2 + $0x278] sm:$0xff]
    %v274 = vld [vmem:[#allocation2 + $0x280] sm:$0xff]
    %v275 = vld [vmem:[#allocation2 + $0x288] sm:$0xff]
    %v276 = vld [vmem:[#allocation2 + $0x290] sm:$0xff]
    %v277 = vld [vmem:[#allocation2 + $0x298] sm:$0xff]
    %v278 = vld [vmem:[#allocation2 + $0x2a0] sm:$0xff]
    %v279 = vld [vmem:[#allocation2 + $0x2a8] sm:$0xff]
    %v280 = vld [vmem:[#allocation2 + $0x2b0] sm:$0xff]
    %v281 = vld [vmem:[#allocation2 + $0x2b8] sm:$0xff]
    %v282 = vld [vmem:[#allocation2 + $0x2c0] sm:$0xff]
    %v283 = vld [vmem:[#allocation2 + $0x2c8] sm:$0xff]
    %v284 = vld [vmem:[#allocation2 + $0x2d0] sm:$0xff]
    %v285 = vld [vmem:[#allocation2 + $0x2d8] sm:$0xff]
    %v286 = vld [vmem:[#allocation2 + $0x2e0] sm:$0xff]
    %v287 = vld [vmem:[#allocation2 + $0x2e8] sm:$0xff]
    %v288 = vld [vmem:[#allocation2 + $0x2f0] sm:$0xff]
    %v289 = vld [vmem:[#allocation2 + $0x2f8] sm:$0xff]
    %v290 = vld [vmem:[#allocation2 + $0x300] sm:$0xff]
    %v291 = vld [vmem:[#allocation2 + $0x308] sm:$0xff]
    %v292 = vld [vmem:[#allocation2 + $0x310] sm:$0xff]
    %v293 = vld [vmem:[#allocation2 + $0x318] sm:$0xff]
    %v294 = vld [vmem:[#allocation2 + $0x320] sm:$0xff]
    %v295 = vld [vmem:[#allocation2 + $0x328] sm:$0xff]
    %v296 = vld [vmem:[#allocation2 + $0x330] sm:$0xff]
    %v297 = vld [vmem:[#allocation2 + $0x338] sm:$0xff]
    %v298 = vld [vmem:[#allocation2 + $0x340] sm:$0xff]
    %v299 = vld [vmem:[#allocation2 + $0x348] sm:$0xff]
    %v300 = vld [vmem:[#allocation2 + $0x350] sm:$0xff]
    %v301 = vld [vmem:[#allocation2 + $0x358] sm:$0xff]
    %v302 = vld [vmem:[#allocation2 + $0x360] sm:$0xff]
    %v303 = vld [vmem:[#allocation2 + $0x368] sm:$0xff]
    %v304 = vld [vmem:[#allocation2 + $0x370] sm:$0xff]
    %v305 = vld [vmem:[#allocation2 + $0x378] sm:$0xff]
    %v306 = vld [vmem:[#allocation2 + $0x380] sm:$0xff]
    %v307 = vld [vmem:[#allocation2 + $0x388] sm:$0xff]
    %v308 = vld [vmem:[#allocation2 + $0x390] sm:$0xff]
    %v309 = vld [vmem:[#allocation2 + $0x398] sm:$0xff]
    %v310 = vld [vmem:[#allocation2 + $0x3a0] sm:$0xff]
    %v311 = vld [vmem:[#allocation2 + $0x3a8] sm:$0xff]
    %v312 = vld [vmem:[#allocation2 + $0x3b0] sm:$0xff]
    %v313 = vld [vmem:[#allocation2 + $0x3b8] sm:$0xff]
    %v314 = vld [vmem:[#allocation2 + $0x3c0] sm:$0xff]
    %v315 = vld [vmem:[#allocation2 + $0x3c8] sm:$0xff]
    %v316 = vld [vmem:[#allocation2 + $0x3d0] sm:$0xff]
    %v317 = vld [vmem:[#allocation2 + $0x3d8] sm:$0xff]
    %v318 = vld [vmem:[#allocation2 + $0x3e0] sm:$0xff]
    %v319 = vld [vmem:[#allocation2 + $0x3e8] sm:$0xff]
    %v320 = vld [vmem:[#allocation2 + $0x3f0] sm:$0xff]
    %v321 = vld [vmem:[#allocation2 + $0x3f8] sm:$0xff]
    %v450 = vunpack.c.l.b16 %v194
    %v451 = vunpack.c.h.b16 %v194
    %v452 = vunpack.c.l.b16 %v195
    %v453 = vunpack.c.h.b16 %v195
    %v454 = vunpack.c.l.b16 %v196
    %v455 = vunpack.c.h.b16 %v196
    %v456 = vunpack.c.l.b16 %v197
    %v457 = vunpack.c.h.b16 %v197
    %v458 = vunpack.c.l.b16 %v198
    %v459 = vunpack.c.h.b16 %v198
    %v460 = vunpack.c.l.b16 %v199
    %v461 = vunpack.c.h.b16 %v199
    %v462 = vunpack.c.l.b16 %v200
    %v463 = vunpack.c.h.b16 %v200
    %v464 = vunpack.c.l.b16 %v201
    %v465 = vunpack.c.h.b16 %v201
    %v466 = vunpack.c.l.b16 %v202
    %v467 = vunpack.c.h.b16 %v202
    %v468 = vunpack.c.l.b16 %v203
    %v469 = vunpack.c.h.b16 %v203
    %v470 = vunpack.c.l.b16 %v204
    %v471 = vunpack.c.h.b16 %v204
    %v472 = vunpack.c.l.b16 %v205
    %v473 = vunpack.c.h.b16 %v205
    %v474 = vunpack.c.l.b16 %v206
    %v475 = vunpack.c.h.b16 %v206
    %v476 = vunpack.c.l.b16 %v207
    %v477 = vunpack.c.h.b16 %v207
    %v478 = vunpack.c.l.b16 %v208
    %v479 = vunpack.c.h.b16 %v208
    %v480 = vunpack.c.l.b16 %v209
    %v481 = vunpack.c.h.b16 %v209
    %v482 = vunpack.c.l.b16 %v210
    %v483 = vunpack.c.h.b16 %v210
    %v484 = vunpack.c.l.b16 %v211
    %v485 = vunpack.c.h.b16 %v211
    %v486 = vunpack.c.l.b16 %v212
    %v487 = vunpack.c.h.b16 %v212
    %v488 = vunpack.c.l.b16 %v213
    %v489 = vunpack.c.h.b16 %v213
    %v490 = vunpack.c.l.b16 %v214
    %v491 = vunpack.c.h.b16 %v214
    %v492 = vunpack.c.l.b16 %v215
    %v493 = vunpack.c.h.b16 %v215
    %v494 = vunpack.c.l.b16 %v216
    %v495 = vunpack.c.h.b16 %v216
    %v496 = vunpack.c.l.b16 %v217
    %v497 = vunpack.c.h.b16 %v217
    %v498 = vunpack.c.l.b16 %v218
    %v499 = vunpack.c.h.b16 %v218
    %v500 = vunpack.c.l.b16 %v219
    %v501 = vunpack.c.h.b16 %v219
    %v502 = vunpack.c.l.b16 %v220
    %v503 = vunpack.c.h.b16 %v220
    %v504 = vunpack.c.l.b16 %v221
    %v505 = vunpack.c.h.b16 %v221
    %v506 = vunpack.c.l.b16 %v222
    %v507 = vunpack.c.h.b16 %v222
    %v508 = vunpack.c.l.b16 %v223
    %v509 = vunpack.c.h.b16 %v223
    %v510 = vunpack.c.l.b16 %v224
    %v511 = vunpack.c.h.b16 %v224
    %v512 = vunpack.c.l.b16 %v225
    %v513 = vunpack.c.h.b16 %v225
    %v514 = vunpack.c.l.b16 %v226
    %v515 = vunpack.c.h.b16 %v226
    %v516 = vunpack.c.l.b16 %v227
    %v517 = vunpack.c.h.b16 %v227
    %v518 = vunpack.c.l.b16 %v228
    %v519 = vunpack.c.h.b16 %v228
    %v520 = vunpack.c.l.b16 %v229
    %v521 = vunpack.c.h.b16 %v229
    %v522 = vunpack.c.l.b16 %v230
    %v523 = vunpack.c.h.b16 %v230
    %v524 = vunpack.c.l.b16 %v231
    %v525 = vunpack.c.h.b16 %v231
    %v526 = vunpack.c.l.b16 %v232
    %v527 = vunpack.c.h.b16 %v232
    %v528 = vunpack.c.l.b16 %v233
    %v529 = vunpack.c.h.b16 %v233
    %v530 = vunpack.c.l.b16 %v234
    %v531 = vunpack.c.h.b16 %v234
    %v532 = vunpack.c.l.b16 %v235
    %v533 = vunpack.c.h.b16 %v235
    %v534 = vunpack.c.l.b16 %v236
    %v535 = vunpack.c.h.b16 %v236
    %v536 = vunpack.c.l.b16 %v237
    %v537 = vunpack.c.h.b16 %v237
    %v538 = vunpack.c.l.b16 %v238
    %v539 = vunpack.c.h.b16 %v238
    %v540 = vunpack.c.l.b16 %v239
    %v541 = vunpack.c.h.b16 %v239
    %v542 = vunpack.c.l.b16 %v240
    %v543 = vunpack.c.h.b16 %v240
    %v544 = vunpack.c.l.b16 %v241
    %v545 = vunpack.c.h.b16 %v241
    %v546 = vunpack.c.l.b16 %v242
    %v547 = vunpack.c.h.b16 %v242
    %v548 = vunpack.c.l.b16 %v243
    %v549 = vunpack.c.h.b16 %v243
    %v550 = vunpack.c.l.b16 %v244
    %v551 = vunpack.c.h.b16 %v244
    %v552 = vunpack.c.l.b16 %v245
    %v553 = vunpack.c.h.b16 %v245
    %v554 = vunpack.c.l.b16 %v246
    %v555 = vunpack.c.h.b16 %v246
    %v556 = vunpack.c.l.b16 %v247
    %v557 = vunpack.c.h.b16 %v247
    %v558 = vunpack.c.l.b16 %v248
    %v559 = vunpack.c.h.b16 %v248
    %v560 = vunpack.c.l.b16 %v249
    %v561 = vunpack.c.h.b16 %v249
    %v562 = vunpack.c.l.b16 %v250
    %v563 = vunpack.c.h.b16 %v250
    %v564 = vunpack.c.l.b16 %v251
    %v565 = vunpack.c.h.b16 %v251
    %v566 = vunpack.c.l.b16 %v252
    %v567 = vunpack.c.h.b16 %v252
    %v568 = vunpack.c.l.b16 %v253
    %v569 = vunpack.c.h.b16 %v253
    %v570 = vunpack.c.l.b16 %v254
    %v571 = vunpack.c.h.b16 %v254
    %v572 = vunpack.c.l.b16 %v255
    %v573 = vunpack.c.h.b16 %v255
    %v574 = vunpack.c.l.b16 %v256
    %v575 = vunpack.c.h.b16 %v256
    %v576 = vunpack.c.l.b16 %v257
    %v577 = vunpack.c.h.b16 %v257
    %v578 = vunpack.c.l.b16 %v258
    %v579 = vunpack.c.h.b16 %v258
    %v580 = vunpack.c.l.b16 %v259
    %v581 = vunpack.c.h.b16 %v259
    %v582 = vunpack.c.l.b16 %v260
    %v583 = vunpack.c.h.b16 %v260
    %v584 = vunpack.c.l.b16 %v261
    %v585 = vunpack.c.h.b16 %v261
    %v586 = vunpack.c.l.b16 %v262
    %v587 = vunpack.c.h.b16 %v262
    %v588 = vunpack.c.l.b16 %v263
    %v589 = vunpack.c.h.b16 %v263
    %v590 = vunpack.c.l.b16 %v264
    %v591 = vunpack.c.h.b16 %v264
    %v592 = vunpack.c.l.b16 %v265
    %v593 = vunpack.c.h.b16 %v265
    %v594 = vunpack.c.l.b16 %v266
    %v595 = vunpack.c.h.b16 %v266
    %v596 = vunpack.c.l.b16 %v267
    %v597 = vunpack.c.h.b16 %v267
    %v598 = vunpack.c.l.b16 %v268
    %v599 = vunpack.c.h.b16 %v268
    %v600 = vunpack.c.l.b16 %v269
    %v601 = vunpack.c.h.b16 %v269
    %v602 = vunpack.c.l.b16 %v270
    %v603 = vunpack.c.h.b16 %v270
    %v604 = vunpack.c.l.b16 %v271
    %v605 = vunpack.c.h.b16 %v271
    %v606 = vunpack.c.l.b16 %v272
    %v607 = vunpack.c.h.b16 %v272
    %v608 = vunpack.c.l.b16 %v273
    %v609 = vunpack.c.h.b16 %v273
    %v610 = vunpack.c.l.b16 %v274
    %v611 = vunpack.c.h.b16 %v274
    %v612 = vunpack.c.l.b16 %v275
    %v613 = vunpack.c.h.b16 %v275
    %v614 = vunpack.c.l.b16 %v276
    %v615 = vunpack.c.h.b16 %v276
    %v616 = vunpack.c.l.b16 %v277
    %v617 = vunpack.c.h.b16 %v277
    %v618 = vunpack.c.l.b16 %v278
    %v619 = vunpack.c.h.b16 %v278
    %v620 = vunpack.c.l.b16 %v279
    %v621 = vunpack.c.h.b16 %v279
    %v622 = vunpack.c.l.b16 %v280
    %v623 = vunpack.c.h.b16 %v280
    %v624 = vunpack.c.l.b16 %v281
    %v625 = vunpack.c.h.b16 %v281
    %v626 = vunpack.c.l.b16 %v282
    %v627 = vunpack.c.h.b16 %v282
    %v628 = vunpack.c.l.b16 %v283
    %v629 = vunpack.c.h.b16 %v283
    %v630 = vunpack.c.l.b16 %v284
    %v631 = vunpack.c.h.b16 %v284
    %v632 = vunpack.c.l.b16 %v285
    %v633 = vunpack.c.h.b16 %v285
    %v634 = vunpack.c.l.b16 %v286
    %v635 = vunpack.c.h.b16 %v286
    %v636 = vunpack.c.l.b16 %v287
    %v637 = vunpack.c.h.b16 %v287
    %v638 = vunpack.c.l.b16 %v288
    %v639 = vunpack.c.h.b16 %v288
    %v640 = vunpack.c.l.b16 %v289
    %v641 = vunpack.c.h.b16 %v289
    %v642 = vunpack.c.l.b16 %v290
    %v643 = vunpack.c.h.b16 %v290
    %v644 = vunpack.c.l.b16 %v291
    %v645 = vunpack.c.h.b16 %v291
    %v646 = vunpack.c.l.b16 %v292
    %v647 = vunpack.c.h.b16 %v292
    %v648 = vunpack.c.l.b16 %v293
    %v649 = vunpack.c.h.b16 %v293
    %v650 = vunpack.c.l.b16 %v294
    %v651 = vunpack.c.h.b16 %v294
    %v652 = vunpack.c.l.b16 %v295
    %v653 = vunpack.c.h.b16 %v295
    %v654 = vunpack.c.l.b16 %v296
    %v655 = vunpack.c.h.b16 %v296
    %v656 = vunpack.c.l.b16 %v297
    %v657 = vunpack.c.h.b16 %v297
    %v658 = vunpack.c.l.b16 %v298
    %v659 = vunpack.c.h.b16 %v298
    %v660 = vunpack.c.l.b16 %v299
    %v661 = vunpack.c.h.b16 %v299
    %v662 = vunpack.c.l.b16 %v300
    %v663 = vunpack.c.h.b16 %v300
    %v664 = vunpack.c.l.b16 %v301
    %v665 = vunpack.c.h.b16 %v301
    %v666 = vunpack.c.l.b16 %v302
    %v667 = vunpack.c.h.b16 %v302
    %v668 = vunpack.c.l.b16 %v303
    %v669 = vunpack.c.h.b16 %v303
    %v670 = vunpack.c.l.b16 %v304
    %v671 = vunpack.c.h.b16 %v304
    %v672 = vunpack.c.l.b16 %v305
    %v673 = vunpack.c.h.b16 %v305
    %v674 = vunpack.c.l.b16 %v306
    %v675 = vunpack.c.h.b16 %v306
    %v676 = vunpack.c.l.b16 %v307
    %v677 = vunpack.c.h.b16 %v307
    %v678 = vunpack.c.l.b16 %v308
    %v679 = vunpack.c.h.b16 %v308
    %v680 = vunpack.c.l.b16 %v309
    %v681 = vunpack.c.h.b16 %v309
    %v682 = vunpack.c.l.b16 %v310
    %v683 = vunpack.c.h.b16 %v310
    %v684 = vunpack.c.l.b16 %v311
    %v685 = vunpack.c.h.b16 %v311
    %v686 = vunpack.c.l.b16 %v312
    %v687 = vunpack.c.h.b16 %v312
    %v688 = vunpack.c.l.b16 %v313
    %v689 = vunpack.c.h.b16 %v313
    %v690 = vunpack.c.l.b16 %v314
    %v691 = vunpack.c.h.b16 %v314
    %v692 = vunpack.c.l.b16 %v315
    %v693 = vunpack.c.h.b16 %v315
    %v694 = vunpack.c.l.b16 %v316
    %v695 = vunpack.c.h.b16 %v316
    %v696 = vunpack.c.l.b16 %v317
    %v697 = vunpack.c.h.b16 %v317
    %v698 = vunpack.c.l.b16 %v318
    %v699 = vunpack.c.h.b16 %v318
    %v700 = vunpack.c.l.b16 %v319
    %v701 = vunpack.c.h.b16 %v319
    %v702 = vunpack.c.l.b16 %v320
    %v703 = vunpack.c.h.b16 %v320
    %v704 = vunpack.c.l.b16 %v321
    %v705 = vunpack.c.h.b16 %v321
    %v706 = vpack.c.b16 %v466, %v450
    %v707 = vpack.c.b16 %v467, %v451
    %v708 = vpack.c.b16 %v468, %v452
    %v709 = vpack.c.b16 %v469, %v453
    %v710 = vpack.c.b16 %v470, %v454
    %v711 = vpack.c.b16 %v471, %v455
    %v712 = vpack.c.b16 %v472, %v456
    %v713 = vpack.c.b16 %v473, %v457
    %v714 = vpack.c.b16 %v474, %v458
    %v715 = vpack.c.b16 %v475, %v459
    %v716 = vpack.c.b16 %v476, %v460
    %v717 = vpack.c.b16 %v477, %v461
    %v718 = vpack.c.b16 %v478, %v462
    %v719 = vpack.c.b16 %v479, %v463
    %v720 = vpack.c.b16 %v480, %v464
    %v721 = vpack.c.b16 %v481, %v465
    %v722 = vpack.c.b16 %v498, %v482
    %v723 = vpack.c.b16 %v499, %v483
    %v724 = vpack.c.b16 %v500, %v484
    %v725 = vpack.c.b16 %v501, %v485
    %v726 = vpack.c.b16 %v502, %v486
    %v727 = vpack.c.b16 %v503, %v487
    %v728 = vpack.c.b16 %v504, %v488
    %v729 = vpack.c.b16 %v505, %v489
    %v730 = vpack.c.b16 %v506, %v490
    %v731 = vpack.c.b16 %v507, %v491
    %v732 = vpack.c.b16 %v508, %v492
    %v733 = vpack.c.b16 %v509, %v493
    %v734 = vpack.c.b16 %v510, %v494
    %v735 = vpack.c.b16 %v511, %v495
    %v736 = vpack.c.b16 %v512, %v496
    %v737 = vpack.c.b16 %v513, %v497
    %v738 = vpack.c.b16 %v530, %v514
    %v739 = vpack.c.b16 %v531, %v515
    %v740 = vpack.c.b16 %v532, %v516
    %v741 = vpack.c.b16 %v533, %v517
    %v742 = vpack.c.b16 %v534, %v518
    %v743 = vpack.c.b16 %v535, %v519
    %v744 = vpack.c.b16 %v536, %v520
    %v745 = vpack.c.b16 %v537, %v521
    %v746 = vpack.c.b16 %v538, %v522
    %v747 = vpack.c.b16 %v539, %v523
    %v748 = vpack.c.b16 %v540, %v524
    %v749 = vpack.c.b16 %v541, %v525
    %v750 = vpack.c.b16 %v542, %v526
    %v751 = vpack.c.b16 %v543, %v527
    %v752 = vpack.c.b16 %v544, %v528
    %v753 = vpack.c.b16 %v545, %v529
    %v754 = vpack.c.b16 %v562, %v546
    %v755 = vpack.c.b16 %v563, %v547
    %v756 = vpack.c.b16 %v564, %v548
    %v757 = vpack.c.b16 %v565, %v549
    %v758 = vpack.c.b16 %v566, %v550
    %v759 = vpack.c.b16 %v567, %v551
    %v760 = vpack.c.b16 %v568, %v552
    %v761 = vpack.c.b16 %v569, %v553
    %v762 = vpack.c.b16 %v570, %v554
    %v763 = vpack.c.b16 %v571, %v555
    %v764 = vpack.c.b16 %v572, %v556
    %v765 = vpack.c.b16 %v573, %v557
    %v766 = vpack.c.b16 %v574, %v558
    %v767 = vpack.c.b16 %v575, %v559
    %v768 = vpack.c.b16 %v576, %v560
    %v769 = vpack.c.b16 %v577, %v561
    %v770 = vpack.c.b16 %v594, %v578
    %v771 = vpack.c.b16 %v595, %v579
    %v772 = vpack.c.b16 %v596, %v580
    %v773 = vpack.c.b16 %v597, %v581
    %v774 = vpack.c.b16 %v598, %v582
    %v775 = vpack.c.b16 %v599, %v583
    %v776 = vpack.c.b16 %v600, %v584
    %v777 = vpack.c.b16 %v601, %v585
    %v778 = vpack.c.b16 %v602, %v586
    %v779 = vpack.c.b16 %v603, %v587
    %v780 = vpack.c.b16 %v604, %v588
    %v781 = vpack.c.b16 %v605, %v589
    %v782 = vpack.c.b16 %v606, %v590
    %v783 = vpack.c.b16 %v607, %v591
    %v784 = vpack.c.b16 %v608, %v592
    %v785 = vpack.c.b16 %v609, %v593
    %v786 = vpack.c.b16 %v626, %v610
    %v787 = vpack.c.b16 %v627, %v611
    %v788 = vpack.c.b16 %v628, %v612
    %v789 = vpack.c.b16 %v629, %v613
    %v790 = vpack.c.b16 %v630, %v614
    %v791 = vpack.c.b16 %v631, %v615
    %v792 = vpack.c.b16 %v632, %v616
    %v793 = vpack.c.b16 %v633, %v617
    %v794 = vpack.c.b16 %v634, %v618
    %v795 = vpack.c.b16 %v635, %v619
    %v796 = vpack.c.b16 %v636, %v620
    %v797 = vpack.c.b16 %v637, %v621
    %v798 = vpack.c.b16 %v638, %v622
    %v799 = vpack.c.b16 %v639, %v623
    %v800 = vpack.c.b16 %v640, %v624
    %v801 = vpack.c.b16 %v641, %v625
    %v802 = vpack.c.b16 %v658, %v642
    %v803 = vpack.c.b16 %v659, %v643
    %v804 = vpack.c.b16 %v660, %v644
    %v805 = vpack.c.b16 %v661, %v645
    %v806 = vpack.c.b16 %v662, %v646
    %v807 = vpack.c.b16 %v663, %v647
    %v808 = vpack.c.b16 %v664, %v648
    %v809 = vpack.c.b16 %v665, %v649
    %v810 = vpack.c.b16 %v666, %v650
    %v811 = vpack.c.b16 %v667, %v651
    %v812 = vpack.c.b16 %v668, %v652
    %v813 = vpack.c.b16 %v669, %v653
    %v814 = vpack.c.b16 %v670, %v654
    %v815 = vpack.c.b16 %v671, %v655
    %v816 = vpack.c.b16 %v672, %v656
    %v817 = vpack.c.b16 %v673, %v657
    %v818 = vpack.c.b16 %v690, %v674
    %v819 = vpack.c.b16 %v691, %v675
    %v820 = vpack.c.b16 %v692, %v676
    %v821 = vpack.c.b16 %v693, %v677
    %v822 = vpack.c.b16 %v694, %v678
    %v823 = vpack.c.b16 %v695, %v679
    %v824 = vpack.c.b16 %v696, %v680
    %v825 = vpack.c.b16 %v697, %v681
    %v826 = vpack.c.b16 %v698, %v682
    %v827 = vpack.c.b16 %v699, %v683
    %v828 = vpack.c.b16 %v700, %v684
    %v829 = vpack.c.b16 %v701, %v685
    %v830 = vpack.c.b16 %v702, %v686
    %v831 = vpack.c.b16 %v703, %v687
    %v832 = vpack.c.b16 %v704, %v688
    %v833 = vpack.c.b16 %v705, %v689
    %962 = vmatprep.subr.bf16.mxu0 %v819
    %963 = vmatpush1.bf16.msra.mxu0 %v818
    %964 = vmatprep.subr.bf16.mxu0 %v803
    %965 = vmatpush1.bf16.msra.mxu0 %v802
    %966 = vmatprep.subr.bf16.mxu0 %v787
    %967 = vmatpush1.bf16.msra.mxu0 %v786
    %968 = vmatprep.subr.bf16.mxu0 %v771
    %969 = vmatpush1.bf16.msra.mxu0 %v770
    %970 = vmatprep.subr.bf16.mxu0 %v755
    %971 = vmatpush1.bf16.msra.mxu0 %v754
    %972 = vmatprep.subr.bf16.mxu0 %v739
    %973 = vmatpush1.bf16.msra.mxu0 %v738
    %974 = vmatprep.subr.bf16.mxu0 %v723
    %975 = vmatpush1.bf16.msra.mxu0 %v722
    %976 = vmatprep.subr.bf16.mxu0 %v707
    %977 = vmatpush1.bf16.msra.mxu0 %v706
    %978 = vmatprep.subr.bf16.mxu0 0
    %979 = vmatpush2.bf16.msra.mxu0 0
    %980 = vmatprep.subr.bf16.mxu0 0
    %981 = vmatpush2.bf16.msra.mxu0 0
    %982 = vmatprep.subr.bf16.mxu0 0
    %983 = vmatpush2.bf16.msra.mxu0 0
    %984 = vmatprep.subr.bf16.mxu0 0
    %985 = vmatpush2.bf16.msra.mxu0 0
    %986 = vmatprep.subr.bf16.mxu0 0
    %987 = vmatpush2.bf16.msra.mxu0 0
    %988 = vmatprep.subr.bf16.mxu0 0
    %989 = vmatpush2.bf16.msra.mxu0 0
    %990 = vmatprep.subr.bf16.mxu0 0
    %991 = vmatpush2.bf16.msra.mxu0 0
    %992 = vmatprep.subr.bf16.mxu0 0
    %993 = vmatpush2.bf16.msra.mxu0 0
    %994 = vmatprep.mubr.bf16.mxu0 0
    %995 = vmatmul.mubr.bf16.gmra.mxu0 %v48
    %v996 = vpop.f32.mrf.mxu0
    %v997 = vadd.f32 0.0, %v996
    %v998 = vpop.f32.mrf.mxu0
    %v999 = vadd.f32 0.0, %v998
    %v1000 = vpop.f32.mrf.mxu0
    %v1001 = vpop.f32.mrf.mxu0
    %1002 = vdwg.mxu0
    %1003 = vmatprep.subr.bf16.mxu0 %v821
    %1004 = vmatpush1.bf16.msra.mxu0 %v820
    %1005 = vmatprep.subr.bf16.mxu0 %v805
    %1006 = vmatpush1.bf16.msra.mxu0 %v804
    %1007 = vmatprep.subr.bf16.mxu0 %v789
    %1008 = vmatpush1.bf16.msra.mxu0 %v788
    %1009 = vmatprep.subr.bf16.mxu0 %v773
    %1010 = vmatpush1.bf16.msra.mxu0 %v772
    %1011 = vmatprep.subr.bf16.mxu0 %v757
    %1012 = vmatpush1.bf16.msra.mxu0 %v756
    %1013 = vmatprep.subr.bf16.mxu0 %v741
    %1014 = vmatpush1.bf16.msra.mxu0 %v740
    %1015 = vmatprep.subr.bf16.mxu0 %v725
    %1016 = vmatpush1.bf16.msra.mxu0 %v724
    %1017 = vmatprep.subr.bf16.mxu0 %v709
    %1018 = vmatpush1.bf16.msra.mxu0 %v708
    %1019 = vmatprep.subr.bf16.mxu0 0
    %1020 = vmatpush2.bf16.msra.mxu0 0
    %1021 = vmatprep.subr.bf16.mxu0 0
    %1022 = vmatpush2.bf16.msra.mxu0 0
    %1023 = vmatprep.subr.bf16.mxu0 0
    %1024 = vmatpush2.bf16.msra.mxu0 0
    %1025 = vmatprep.subr.bf16.mxu0 0
    %1026 = vmatpush2.bf16.msra.mxu0 0
    %1027 = vmatprep.subr.bf16.mxu0 0
    %1028 = vmatpush2.bf16.msra.mxu0 0
    %1029 = vmatprep.subr.bf16.mxu0 0
    %1030 = vmatpush2.bf16.msra.mxu0 0
    %1031 = vmatprep.subr.bf16.mxu0 0
    %1032 = vmatpush2.bf16.msra.mxu0 0
    %1033 = vmatprep.subr.bf16.mxu0 0
    %1034 = vmatpush2.bf16.msra.mxu0 0
    %1035 = vmatprep.mubr.bf16.mxu0 0
    %1036 = vmatmul.mubr.bf16.gmra.mxu0 %v48
    %v1037 = vpop.f32.mrf.mxu0
    %v1038 = vadd.f32 0.0, %v1037
    %v1039 = vpop.f32.mrf.mxu0
    %v1040 = vadd.f32 0.0, %v1039
    %v1041 = vpop.f32.mrf.mxu0
    %v1042 = vpop.f32.mrf.mxu0
    %1043 = vdwg.mxu0
    %1044 = vmatprep.subr.bf16.mxu0 %v823
    %1045 = vmatpush1.bf16.msra.mxu0 %v822
    %1046 = vmatprep.subr.bf16.mxu0 %v807
    %1047 = vmatpush1.bf16.msra.mxu0 %v806
    %1048 = vmatprep.subr.bf16.mxu0 %v791
    %1049 = vmatpush1.bf16.msra.mxu0 %v790
    %1050 = vmatprep.subr.bf16.mxu0 %v775
    %1051 = vmatpush1.bf16.msra.mxu0 %v774
    %1052 = vmatprep.subr.bf16.mxu0 %v759
    %1053 = vmatpush1.bf16.msra.mxu0 %v758
    %1054 = vmatprep.subr.bf16.mxu0 %v743
    %1055 = vmatpush1.bf16.msra.mxu0 %v742
    %1056 = vmatprep.subr.bf16.mxu0 %v727
    %1057 = vmatpush1.bf16.msra.mxu0 %v726
    %1058 = vmatprep.subr.bf16.mxu0 %v711
    %1059 = vmatpush1.bf16.msra.mxu0 %v710
    %1060 = vmatprep.subr.bf16.mxu0 0
    %1061 = vmatpush2.bf16.msra.mxu0 0
    %1062 = vmatprep.subr.bf16.mxu0 0
    %1063 = vmatpush2.bf16.msra.mxu0 0
    %1064 = vmatprep.subr.bf16.mxu0 0
    %1065 = vmatpush2.bf16.msra.mxu0 0
    %1066 = vmatprep.subr.bf16.mxu0 0
    %1067 = vmatpush2.bf16.msra.mxu0 0
    %1068 = vmatprep.subr.bf16.mxu0 0
    %1069 = vmatpush2.bf16.msra.mxu0 0
    %1070 = vmatprep.subr.bf16.mxu0 0
    %1071 = vmatpush2.bf16.msra.mxu0 0
    %1072 = vmatprep.subr.bf16.mxu0 0
    %1073 = vmatpush2.bf16.msra.mxu0 0
    %1074 = vmatprep.subr.bf16.mxu0 0
    %1075 = vmatpush2.bf16.msra.mxu0 0
    %1076 = vmatprep.mubr.bf16.mxu0 0
    %1077 = vmatmul.mubr.bf16.gmra.mxu0 %v48
    %v1078 = vpop.f32.mrf.mxu0
    %v1079 = vadd.f32 0.0, %v1078
    %v1080 = vpop.f32.mrf.mxu0
    %v1081 = vadd.f32 0.0, %v1080
    %v1082 = vpop.f32.mrf.mxu0
    %v1083 = vpop.f32.mrf.mxu0
    %1084 = vdwg.mxu0
    %1085 = vmatprep.subr.bf16.mxu0 %v825
    %1086 = vmatpush1.bf16.msra.mxu0 %v824
    %1087 = vmatprep.subr.bf16.mxu0 %v809
    %1088 = vmatpush1.bf16.msra.mxu0 %v808
    %1089 = vmatprep.subr.bf16.mxu0 %v793
    %1090 = vmatpush1.bf16.msra.mxu0 %v792
    %1091 = vmatprep.subr.bf16.mxu0 %v777
    %1092 = vmatpush1.bf16.msra.mxu0 %v776
    %1093 = vmatprep.subr.bf16.mxu0 %v761
    %1094 = vmatpush1.bf16.msra.mxu0 %v760
    %1095 = vmatprep.subr.bf16.mxu0 %v745
    %1096 = vmatpush1.bf16.msra.mxu0 %v744
    %1097 = vmatprep.subr.bf16.mxu0 %v729
    %1098 = vmatpush1.bf16.msra.mxu0 %v728
    %1099 = vmatprep.subr.bf16.mxu0 %v713
    %1100 = vmatpush1.bf16.msra.mxu0 %v712
    %1101 = vmatprep.subr.bf16.mxu0 0
    %1102 = vmatpush2.bf16.msra.mxu0 0
    %1103 = vmatprep.subr.bf16.mxu0 0
    %1104 = vmatpush2.bf16.msra.mxu0 0
    %1105 = vmatprep.subr.bf16.mxu0 0
    %1106 = vmatpush2.bf16.msra.mxu0 0
    %1107 = vmatprep.subr.bf16.mxu0 0
    %1108 = vmatpush2.bf16.msra.mxu0 0
    %1109 = vmatprep.subr.bf16.mxu0 0
    %1110 = vmatpush2.bf16.msra.mxu0 0
    %1111 = vmatprep.subr.bf16.mxu0 0
    %1112 = vmatpush2.bf16.msra.mxu0 0
    %1113 = vmatprep.subr.bf16.mxu0 0
    %1114 = vmatpush2.bf16.msra.mxu0 0
    %1115 = vmatprep.subr.bf16.mxu0 0
    %1116 = vmatpush2.bf16.msra.mxu0 0
    %1117 = vmatprep.mubr.bf16.mxu0 0
    %1118 = vmatmul.mubr.bf16.gmra.mxu0 %v48
    %v1119 = vpop.f32.mrf.mxu0
    %v1120 = vadd.f32 0.0, %v1119
    %v1121 = vpop.f32.mrf.mxu0
    %v1122 = vadd.f32 0.0, %v1121
    %v1123 = vpop.f32.mrf.mxu0
    %v1124 = vpop.f32.mrf.mxu0
    %1125 = vdwg.mxu0
    %1126 = vmatprep.subr.bf16.mxu0 %v827
    %1127 = vmatpush1.bf16.msra.mxu0 %v826
    %1128 = vmatprep.subr.bf16.mxu0 %v811
    %1129 = vmatpush1.bf16.msra.mxu0 %v810
    %1130 = vmatprep.subr.bf16.mxu0 %v795
    %1131 = vmatpush1.bf16.msra.mxu0 %v794
    %1132 = vmatprep.subr.bf16.mxu0 %v779
    %1133 = vmatpush1.bf16.msra.mxu0 %v778
    %1134 = vmatprep.subr.bf16.mxu0 %v763
    %1135 = vmatpush1.bf16.msra.mxu0 %v762
    %1136 = vmatprep.subr.bf16.mxu0 %v747
    %1137 = vmatpush1.bf16.msra.mxu0 %v746
    %1138 = vmatprep.subr.bf16.mxu0 %v731
    %1139 = vmatpush1.bf16.msra.mxu0 %v730
    %1140 = vmatprep.subr.bf16.mxu0 %v715
    %1141 = vmatpush1.bf16.msra.mxu0 %v714
    %1142 = vmatprep.subr.bf16.mxu0 0
    %1143 = vmatpush2.bf16.msra.mxu0 0
    %1144 = vmatprep.subr.bf16.mxu0 0
    %1145 = vmatpush2.bf16.msra.mxu0 0
    %1146 = vmatprep.subr.bf16.mxu0 0
    %1147 = vmatpush2.bf16.msra.mxu0 0
    %1148 = vmatprep.subr.bf16.mxu0 0
    %1149 = vmatpush2.bf16.msra.mxu0 0
    %1150 = vmatprep.subr.bf16.mxu0 0
    %1151 = vmatpush2.bf16.msra.mxu0 0
    %1152 = vmatprep.subr.bf16.mxu0 0
    %1153 = vmatpush2.bf16.msra.mxu0 0
    %1154 = vmatprep.subr.bf16.mxu0 0
    %1155 = vmatpush2.bf16.msra.mxu0 0
    %1156 = vmatprep.subr.bf16.mxu0 0
    %1157 = vmatpush2.bf16.msra.mxu0 0
    %1158 = vmatprep.mubr.bf16.mxu0 0
    %1159 = vmatmul.mubr.bf16.gmra.mxu0 %v48
    %v1160 = vpop.f32.mrf.mxu0
    %v1161 = vadd.f32 0.0, %v1160
    %v1162 = vpop.f32.mrf.mxu0
    %v1163 = vadd.f32 0.0, %v1162
    %v1164 = vpop.f32.mrf.mxu0
    %v1165 = vpop.f32.mrf.mxu0
    %1166 = vdwg.mxu0
    %1167 = vmatprep.subr.bf16.mxu0 %v829
    %1168 = vmatpush1.bf16.msra.mxu0 %v828
    %1169 = vmatprep.subr.bf16.mxu0 %v813
    %1170 = vmatpush1.bf16.msra.mxu0 %v812
    %1171 = vmatprep.subr.bf16.mxu0 %v797
    %1172 = vmatpush1.bf16.msra.mxu0 %v796
    %1173 = vmatprep.subr.bf16.mxu0 %v781
    %1174 = vmatpush1.bf16.msra.mxu0 %v780
    %1175 = vmatprep.subr.bf16.mxu0 %v765
    %1176 = vmatpush1.bf16.msra.mxu0 %v764
    %1177 = vmatprep.subr.bf16.mxu0 %v749
    %1178 = vmatpush1.bf16.msra.mxu0 %v748
    %1179 = vmatprep.subr.bf16.mxu0 %v733
    %1180 = vmatpush1.bf16.msra.mxu0 %v732
    %1181 = vmatprep.subr.bf16.mxu0 %v717
    %1182 = vmatpush1.bf16.msra.mxu0 %v716
    %1183 = vmatprep.subr.bf16.mxu0 0
    %1184 = vmatpush2.bf16.msra.mxu0 0
    %1185 = vmatprep.subr.bf16.mxu0 0
    %1186 = vmatpush2.bf16.msra.mxu0 0
    %1187 = vmatprep.subr.bf16.mxu0 0
    %1188 = vmatpush2.bf16.msra.mxu0 0
    %1189 = vmatprep.subr.bf16.mxu0 0
    %1190 = vmatpush2.bf16.msra.mxu0 0
    %1191 = vmatprep.subr.bf16.mxu0 0
    %1192 = vmatpush2.bf16.msra.mxu0 0
    %1193 = vmatprep.subr.bf16.mxu0 0
    %1194 = vmatpush2.bf16.msra.mxu0 0
    %1195 = vmatprep.subr.bf16.mxu0 0
    %1196 = vmatpush2.bf16.msra.mxu0 0
    %1197 = vmatprep.subr.bf16.mxu0 0
    %1198 = vmatpush2.bf16.msra.mxu0 0
    %1199 = vmatprep.mubr.bf16.mxu0 0
    %1200 = vmatmul.mubr.bf16.gmra.mxu0 %v48
    %v1201 = vpop.f32.mrf.mxu0
    %v1202 = vadd.f32 0.0, %v1201
    %v1203 = vpop.f32.mrf.mxu0
    %v1204 = vadd.f32 0.0, %v1203
    %v1205 = vpop.f32.mrf.mxu0
    %v1206 = vpop.f32.mrf.mxu0
    %1207 = vdwg.mxu0
    %1208 = vmatprep.subr.bf16.mxu0 %v831
    %1209 = vmatpush1.bf16.msra.mxu0 %v830
    %1210 = vmatprep.subr.bf16.mxu0 %v815
    %1211 = vmatpush1.bf16.msra.mxu0 %v814
    %1212 = vmatprep.subr.bf16.mxu0 %v799
    %1213 = vmatpush1.bf16.msra.mxu0 %v798
    %1214 = vmatprep.subr.bf16.mxu0 %v783
    %1215 = vmatpush1.bf16.msra.mxu0 %v782
    %1216 = vmatprep.subr.bf16.mxu0 %v767
    %1217 = vmatpush1.bf16.msra.mxu0 %v766
    %1218 = vmatprep.subr.bf16.mxu0 %v751
    %1219 = vmatpush1.bf16.msra.mxu0 %v750
    %1220 = vmatprep.subr.bf16.mxu0 %v735
    %1221 = vmatpush1.bf16.msra.mxu0 %v734
    %1222 = vmatprep.subr.bf16.mxu0 %v719
    %1223 = vmatpush1.bf16.msra.mxu0 %v718
    %1224 = vmatprep.subr.bf16.mxu0 0
    %1225 = vmatpush2.bf16.msra.mxu0 0
    %1226 = vmatprep.subr.bf16.mxu0 0
    %1227 = vmatpush2.bf16.msra.mxu0 0
    %1228 = vmatprep.subr.bf16.mxu0 0
    %1229 = vmatpush2.bf16.msra.mxu0 0
    %1230 = vmatprep.subr.bf16.mxu0 0
    %1231 = vmatpush2.bf16.msra.mxu0 0
    %1232 = vmatprep.subr.bf16.mxu0 0
    %1233 = vmatpush2.bf16.msra.mxu0 0
    %1234 = vmatprep.subr.bf16.mxu0 0
    %1235 = vmatpush2.bf16.msra.mxu0 0
    %1236 = vmatprep.subr.bf16.mxu0 0
    %1237 = vmatpush2.bf16.msra.mxu0 0
    %1238 = vmatprep.subr.bf16.mxu0 0
    %1239 = vmatpush2.bf16.msra.mxu0 0
    %1240 = vmatprep.mubr.bf16.mxu0 0
    %1241 = vmatmul.mubr.bf16.gmra.mxu0 %v48
    %v1242 = vpop.f32.mrf.mxu0
    %v1243 = vadd.f32 0.0, %v1242
    %v1244 = vpop.f32.mrf.mxu0
    %v1245 = vadd.f32 0.0, %v1244
    %v1246 = vpop.f32.mrf.mxu0
    %v1247 = vpop.f32.mrf.mxu0
    %1248 = vdwg.mxu0
    %1249 = vmatprep.subr.bf16.mxu0 %v833
    %1250 = vmatpush1.bf16.msra.mxu0 %v832
    %1251 = vmatprep.subr.bf16.mxu0 %v817
    %1252 = vmatpush1.bf16.msra.mxu0 %v816
    %1253 = vmatprep.subr.bf16.mxu0 %v801
    %1254 = vmatpush1.bf16.msra.mxu0 %v800
    %1255 = vmatprep.subr.bf16.mxu0 %v785
    %1256 = vmatpush1.bf16.msra.mxu0 %v784
    %1257 = vmatprep.subr.bf16.mxu0 %v769
    %1258 = vmatpush1.bf16.msra.mxu0 %v768
    %1259 = vmatprep.subr.bf16.mxu0 %v753
    %1260 = vmatpush1.bf16.msra.mxu0 %v752
    %1261 = vmatprep.subr.bf16.mxu0 %v737
    %1262 = vmatpush1.bf16.msra.mxu0 %v736
    %1263 = vmatprep.subr.bf16.mxu0 %v721
    %1264 = vmatpush1.bf16.msra.mxu0 %v720
    %1265 = vmatprep.subr.bf16.mxu0 0
    %1266 = vmatpush2.bf16.msra.mxu0 0
    %1267 = vmatprep.subr.bf16.mxu0 0
    %1268 = vmatpush2.bf16.msra.mxu0 0
    %1269 = vmatprep.subr.bf16.mxu0 0
    %1270 = vmatpush2.bf16.msra.mxu0 0
    %1271 = vmatprep.subr.bf16.mxu0 0
    %1272 = vmatpush2.bf16.msra.mxu0 0
    %1273 = vmatprep.subr.bf16.mxu0 0
    %1274 = vmatpush2.bf16.msra.mxu0 0
    %1275 = vmatprep.subr.bf16.mxu0 0
    %1276 = vmatpush2.bf16.msra.mxu0 0
    %1277 = vmatprep.subr.bf16.mxu0 0
    %1278 = vmatpush2.bf16.msra.mxu0 0
    %1279 = vmatprep.subr.bf16.mxu0 0
    %1280 = vmatpush2.bf16.msra.mxu0 0
    %1281 = vmatprep.mubr.bf16.mxu0 0
    %1282 = vmatmul.mubr.bf16.gmra.mxu0 %v48
    %v1283 = vpop.f32.mrf.mxu0
    %v1284 = vadd.f32 0.0, %v1283
    %v1285 = vpop.f32.mrf.mxu0
    %v1286 = vadd.f32 0.0, %v1285
    %v1287 = vpop.f32.mrf.mxu0
    %v1288 = vpop.f32.mrf.mxu0
    %1289 = vdwg.mxu0
    %v1290 = vxor.u32 %v997, 2147483648
    %v1291 = vxor.u32 %v999, 2147483648
    %v1292 = vxor.u32 %v1038, 2147483648
    %v1293 = vxor.u32 %v1040, 2147483648
    %v1294 = vxor.u32 %v1079, 2147483648
    %v1295 = vxor.u32 %v1081, 2147483648
    %v1296 = vxor.u32 %v1120, 2147483648
    %v1297 = vxor.u32 %v1122, 2147483648
    %v1298 = vmul.f32 %v1290, 1.442695
    %v1299 = vpow.pop %v1298
    %v1300 = vmul.f32 %v1291, 1.442695
    %v1301 = vpow.pop %v1300
    %v1302 = vmul.f32 %v1292, 1.442695
    %v1303 = vpow.pop %v1302
    %v1304 = vmul.f32 %v1293, 1.442695
    %v1305 = vpow.pop %v1304
    %v1306 = vmul.f32 %v1294, 1.442695
    %v1307 = vpow.pop %v1306
    %v1308 = vmul.f32 %v1295, 1.442695
    %v1309 = vpow.pop %v1308
    %v1310 = vmul.f32 %v1296, 1.442695
    %v1311 = vpow.pop %v1310
    %v1312 = vmul.f32 %v1297, 1.442695
    %v1313 = vpow.pop %v1312
    %v1314 = vadd.f32 %v1299, 1.0
    %v1315 = vadd.f32 %v1301, 1.0
    %v1316 = vadd.f32 %v1303, 1.0
    %v1317 = vadd.f32 %v1305, 1.0
    %v1318 = vadd.f32 %v1307, 1.0
    %v1319 = vadd.f32 %v1309, 1.0
    %v1320 = vadd.f32 %v1311, 1.0
    %v1321 = vadd.f32 %v1313, 1.0
    %v1322 = vrcp.pop %v1314
    %v1323 = vmul.f32 1.0, %v1322
    %v1324 = vrcp.pop %v1315
    %v1325 = vmul.f32 1.0, %v1324
    %v1326 = vrcp.pop %v1316
    %v1327 = vmul.f32 1.0, %v1326
    %v1328 = vrcp.pop %v1317
    %v1329 = vmul.f32 1.0, %v1328
    %v1330 = vrcp.pop %v1318
    %v1331 = vmul.f32 1.0, %v1330
    %v1332 = vrcp.pop %v1319
    %v1333 = vmul.f32 1.0, %v1332
    %v1334 = vrcp.pop %v1320
    %v1335 = vmul.f32 1.0, %v1334
    %v1336 = vrcp.pop %v1321
    %v1337 = vmul.f32 1.0, %v1336
    %v1338 = vmul.f32 %v997, %v1323
    %v1339 = vmul.f32 %v999, %v1325
    %v1340 = vmul.f32 %v1038, %v1327
    %v1341 = vmul.f32 %v1040, %v1329
    %v1342 = vmul.f32 %v1079, %v1331
    %v1343 = vmul.f32 %v1081, %v1333
    %v1344 = vmul.f32 %v1120, %v1335
    %v1345 = vmul.f32 %v1122, %v1337
    %v1346 = vmul.f32 %v1338, %v1161
    %v1347 = vmul.f32 %v1339, %v1163
    %v1348 = vmul.f32 %v1340, %v1202
    %v1349 = vmul.f32 %v1341, %v1204
    %v1350 = vmul.f32 %v1342, %v1243
    %v1351 = vmul.f32 %v1343, %v1245
    %v1352 = vmul.f32 %v1344, %v1284
    %v1353 = vmul.f32 %v1345, %v1286
    %v1354 = vadd.s32 %v143, 128
    %v1355 = vadd.s32 %v143, 256
    %v1356 = vadd.s32 %v143, 384
    %v1357 = vadd.s32 %v143, 512
    %v1358 = vadd.s32 %v143, 640
    %v1359 = vadd.s32 %v143, 768
    %v1360 = vadd.s32 %v143, 896
    %v1361 = vlaneseq
    %v1362 = vshrl.u32 %v1361, 7
    %v1363 = vmul.u32 %v1362, 128
    %vm1364 = vcmp.ge.s32.totalorder %v143, %v1363
    %vm1365 = vcmp.ge.s32.totalorder %v1354, %v1363
    %vm1366 = vcmp.ge.s32.totalorder %v1355, %v1363
    %vm1367 = vcmp.ge.s32.totalorder %v1356, %v1363
    %vm1368 = vcmp.ge.s32.totalorder %v1357, %v1363
    %vm1369 = vcmp.ge.s32.totalorder %v1358, %v1363
    %vm1370 = vcmp.ge.s32.totalorder %v1359, %v1363
    %vm1371 = vcmp.ge.s32.totalorder %v1360, %v1363
    %v1372 = vadd.s32 %v1362, 1
    %v1373 = vmul.u32 %v1372, 128
    %vm1374 = vcmp.lt.s32.totalorder %v143, %v1373
    %vm1375 = vcmp.lt.s32.totalorder %v1354, %v1373
    %vm1376 = vcmp.lt.s32.totalorder %v1355, %v1373
    %vm1377 = vcmp.lt.s32.totalorder %v1356, %v1373
    %vm1378 = vcmp.lt.s32.totalorder %v1357, %v1373
    %vm1379 = vcmp.lt.s32.totalorder %v1358, %v1373
    %vm1380 = vcmp.lt.s32.totalorder %v1359, %v1373
    %vm1381 = vcmp.lt.s32.totalorder %v1360, %v1373
    %vm1382 = vmand %vm1364, %vm1374
    %vm1383 = vmand %vm1365, %vm1375
    %vm1384 = vmand %vm1366, %vm1376
    %vm1385 = vmand %vm1367, %vm1377
    %vm1386 = vmand %vm1368, %vm1378
    %vm1387 = vmand %vm1369, %vm1379
    %vm1388 = vmand %vm1370, %vm1380
    %vm1389 = vmand %vm1371, %vm1381
    %v1390 = vsel %vm1382, 1, 0
    %v1391 = vsel %vm1383, 1, 0
    %v1392 = vsel %vm1384, 1, 0
    %v1393 = vsel %vm1385, 1, 0
    %v1394 = vsel %vm1386, 1, 0
    %v1395 = vsel %vm1387, 1, 0
    %v1396 = vsel %vm1388, 1, 0
    %v1397 = vsel %vm1389, 1, 0
    %v1398 = vcvt.s32.f32 %v1390
    %v1399 = vcvt.s32.f32 %v1391
    %v1400 = vcvt.s32.f32 %v1392
    %v1401 = vcvt.s32.f32 %v1393
    %v1402 = vcvt.s32.f32 %v1394
    %v1403 = vcvt.s32.f32 %v1395
    %v1404 = vcvt.s32.f32 %v1396
    %v1405 = vcvt.s32.f32 %v1397
    %v1407 = vsel %vm135, %v193, 0
    %1409 = vmatprep.subr.mxu0 0.0
    %1410 = vmatpush1.msra.mxu0 0.0
    %1411 = vmatprep.subr.mxu0 0.0
    %1412 = vmatpush1.msra.mxu0 0.0
    %1413 = vmatprep.subr.mxu0 0.0
    %1414 = vmatpush1.msra.mxu0 0.0
    %1415 = vmatprep.subr.mxu0 0.0
    %1416 = vmatpush1.msra.mxu0 0.0
    %1417 = vmatprep.subr.mxu0 0.0
    %1418 = vmatpush1.msra.mxu0 0.0
    %1419 = vmatprep.subr.mxu0 0.0
    %1420 = vmatpush1.msra.mxu0 0.0
    %1421 = vmatprep.subr.mxu0 0.0
    %1422 = vmatpush1.msra.mxu0 0.0
    %1423 = vmatprep.subr.mxu0 0.0
    %1424 = vmatpush1.msra.mxu0 0.0
    %1425 = vmatprep.subr.mxu0 0.0
    %1426 = vmatpush1.msra.mxu0 0.0
    %1427 = vmatprep.subr.mxu0 0.0
    %1428 = vmatpush1.msra.mxu0 0.0
    %1429 = vmatprep.subr.mxu0 0.0
    %1430 = vmatpush1.msra.mxu0 0.0
    %1431 = vmatprep.subr.mxu0 0.0
    %1432 = vmatpush1.msra.mxu0 0.0
    %1433 = vmatprep.subr.mxu0 0.0
    %1434 = vmatpush1.msra.mxu0 0.0
    %1435 = vmatprep.subr.mxu0 0.0
    %1436 = vmatpush1.msra.mxu0 0.0
    %1437 = vmatprep.subr.mxu0 0.0
    %1438 = vmatpush1.msra.mxu0 0.0
    %1439 = vmatprep.subr.mxu0 %v1399
    %1440 = vmatpush1.msra.mxu0 %v1398
    %1441 = vmatprep.subr.mxu0 0.0
    %1442 = vmatpush2.msra.mxu0 0.0
    %1443 = vmatprep.subr.mxu0 0.0
    %1444 = vmatpush2.msra.mxu0 0.0
    %1445 = vmatprep.subr.mxu0 0.0
    %1446 = vmatpush2.msra.mxu0 0.0
    %1447 = vmatprep.subr.mxu0 0.0
    %1448 = vmatpush2.msra.mxu0 0.0
    %1449 = vmatprep.subr.mxu0 0.0
    %1450 = vmatpush2.msra.mxu0 0.0
    %1451 = vmatprep.subr.mxu0 0.0
    %1452 = vmatpush2.msra.mxu0 0.0
    %1453 = vmatprep.subr.mxu0 0.0
    %1454 = vmatpush2.msra.mxu0 0.0
    %1455 = vmatprep.subr.mxu0 0.0
    %1456 = vmatpush2.msra.mxu0 0.0
    %1457 = vmatprep.subr.mxu0 0.0
    %1458 = vmatpush2.msra.mxu0 0.0
    %1459 = vmatprep.subr.mxu0 0.0
    %1460 = vmatpush2.msra.mxu0 0.0
    %1461 = vmatprep.subr.mxu0 0.0
    %1462 = vmatpush2.msra.mxu0 0.0
    %1463 = vmatprep.subr.mxu0 0.0
    %1464 = vmatpush2.msra.mxu0 0.0
    %1465 = vmatprep.subr.mxu0 0.0
    %1466 = vmatpush2.msra.mxu0 0.0
    %1467 = vmatprep.subr.mxu0 0.0
    %1468 = vmatpush2.msra.mxu0 0.0
    %1469 = vmatprep.subr.mxu0 0.0
    %1470 = vmatpush2.msra.mxu0 0.0
    %1471 = vmatprep.subr.mxu0 0.0
    %1472 = vmatpush2.msra.mxu0 0.0
    %1473 = vmatprep.mubr.f32.mxu0 0.0
    %1474 = vmatmul.mubr.f32.gmra.mxu0 %v1407
    %v1475 = vpop.f32.mrf.mxu0
    %v1476 = vadd.f32 0.0, %v1475
    %v1477 = vpop.f32.mrf.mxu0
    %v1478 = vadd.f32 0.0, %v1477
    %1479 = vdwg.mxu0
    %1480 = vmatprep.subr.mxu0 0.0
    %1481 = vmatpush1.msra.mxu0 0.0
    %1482 = vmatprep.subr.mxu0 0.0
    %1483 = vmatpush1.msra.mxu0 0.0
    %1484 = vmatprep.subr.mxu0 0.0
    %1485 = vmatpush1.msra.mxu0 0.0
    %1486 = vmatprep.subr.mxu0 0.0
    %1487 = vmatpush1.msra.mxu0 0.0
    %1488 = vmatprep.subr.mxu0 0.0
    %1489 = vmatpush1.msra.mxu0 0.0
    %1490 = vmatprep.subr.mxu0 0.0
    %1491 = vmatpush1.msra.mxu0 0.0
    %1492 = vmatprep.subr.mxu0 0.0
    %1493 = vmatpush1.msra.mxu0 0.0
    %1494 = vmatprep.subr.mxu0 0.0
    %1495 = vmatpush1.msra.mxu0 0.0
    %1496 = vmatprep.subr.mxu0 0.0
    %1497 = vmatpush1.msra.mxu0 0.0
    %1498 = vmatprep.subr.mxu0 0.0
    %1499 = vmatpush1.msra.mxu0 0.0
    %1500 = vmatprep.subr.mxu0 0.0
    %1501 = vmatpush1.msra.mxu0 0.0
    %1502 = vmatprep.subr.mxu0 0.0
    %1503 = vmatpush1.msra.mxu0 0.0
    %1504 = vmatprep.subr.mxu0 0.0
    %1505 = vmatpush1.msra.mxu0 0.0
    %1506 = vmatprep.subr.mxu0 0.0
    %1507 = vmatpush1.msra.mxu0 0.0
    %1508 = vmatprep.subr.mxu0 0.0
    %1509 = vmatpush1.msra.mxu0 0.0
    %1510 = vmatprep.subr.mxu0 %v1401
    %1511 = vmatpush1.msra.mxu0 %v1400
    %1512 = vmatprep.subr.mxu0 0.0
    %1513 = vmatpush2.msra.mxu0 0.0
    %1514 = vmatprep.subr.mxu0 0.0
    %1515 = vmatpush2.msra.mxu0 0.0
    %1516 = vmatprep.subr.mxu0 0.0
    %1517 = vmatpush2.msra.mxu0 0.0
    %1518 = vmatprep.subr.mxu0 0.0
    %1519 = vmatpush2.msra.mxu0 0.0
    %1520 = vmatprep.subr.mxu0 0.0
    %1521 = vmatpush2.msra.mxu0 0.0
    %1522 = vmatprep.subr.mxu0 0.0
    %1523 = vmatpush2.msra.mxu0 0.0
    %1524 = vmatprep.subr.mxu0 0.0
    %1525 = vmatpush2.msra.mxu0 0.0
    %1526 = vmatprep.subr.mxu0 0.0
    %1527 = vmatpush2.msra.mxu0 0.0
    %1528 = vmatprep.subr.mxu0 0.0
    %1529 = vmatpush2.msra.mxu0 0.0
    %1530 = vmatprep.subr.mxu0 0.0
    %1531 = vmatpush2.msra.mxu0 0.0
    %1532 = vmatprep.subr.mxu0 0.0
    %1533 = vmatpush2.msra.mxu0 0.0
    %1534 = vmatprep.subr.mxu0 0.0
    %1535 = vmatpush2.msra.mxu0 0.0
    %1536 = vmatprep.subr.mxu0 0.0
    %1537 = vmatpush2.msra.mxu0 0.0
    %1538 = vmatprep.subr.mxu0 0.0
    %1539 = vmatpush2.msra.mxu0 0.0
    %1540 = vmatprep.subr.mxu0 0.0
    %1541 = vmatpush2.msra.mxu0 0.0
    %1542 = vmatprep.subr.mxu0 0.0
    %1543 = vmatpush2.msra.mxu0 0.0
    %1544 = vmatprep.mubr.f32.mxu0 0.0
    %1545 = vmatmul.mubr.f32.gmra.mxu0 %v1407
    %v1546 = vpop.f32.mrf.mxu0
    %v1547 = vadd.f32 0.0, %v1546
    %v1548 = vpop.f32.mrf.mxu0
    %v1549 = vadd.f32 0.0, %v1548
    %1550 = vdwg.mxu0
    %1551 = vmatprep.subr.mxu0 0.0
    %1552 = vmatpush1.msra.mxu0 0.0
    %1553 = vmatprep.subr.mxu0 0.0
    %1554 = vmatpush1.msra.mxu0 0.0
    %1555 = vmatprep.subr.mxu0 0.0
    %1556 = vmatpush1.msra.mxu0 0.0
    %1557 = vmatprep.subr.mxu0 0.0
    %1558 = vmatpush1.msra.mxu0 0.0
    %1559 = vmatprep.subr.mxu0 0.0
    %1560 = vmatpush1.msra.mxu0 0.0
    %1561 = vmatprep.subr.mxu0 0.0
    %1562 = vmatpush1.msra.mxu0 0.0
    %1563 = vmatprep.subr.mxu0 0.0
    %1564 = vmatpush1.msra.mxu0 0.0
    %1565 = vmatprep.subr.mxu0 0.0
    %1566 = vmatpush1.msra.mxu0 0.0
    %1567 = vmatprep.subr.mxu0 0.0
    %1568 = vmatpush1.msra.mxu0 0.0
    %1569 = vmatprep.subr.mxu0 0.0
    %1570 = vmatpush1.msra.mxu0 0.0
    %1571 = vmatprep.subr.mxu0 0.0
    %1572 = vmatpush1.msra.mxu0 0.0
    %1573 = vmatprep.subr.mxu0 0.0
    %1574 = vmatpush1.msra.mxu0 0.0
    %1575 = vmatprep.subr.mxu0 0.0
    %1576 = vmatpush1.msra.mxu0 0.0
    %1577 = vmatprep.subr.mxu0 0.0
    %1578 = vmatpush1.msra.mxu0 0.0
    %1579 = vmatprep.subr.mxu0 0.0
    %1580 = vmatpush1.msra.mxu0 0.0
    %1581 = vmatprep.subr.mxu0 %v1403
    %1582 = vmatpush1.msra.mxu0 %v1402
    %1583 = vmatprep.subr.mxu0 0.0
    %1584 = vmatpush2.msra.mxu0 0.0
    %1585 = vmatprep.subr.mxu0 0.0
    %1586 = vmatpush2.msra.mxu0 0.0
    %1587 = vmatprep.subr.mxu0 0.0
    %1588 = vmatpush2.msra.mxu0 0.0
    %1589 = vmatprep.subr.mxu0 0.0
    %1590 = vmatpush2.msra.mxu0 0.0
    %1591 = vmatprep.subr.mxu0 0.0
    %1592 = vmatpush2.msra.mxu0 0.0
    %1593 = vmatprep.subr.mxu0 0.0
    %1594 = vmatpush2.msra.mxu0 0.0
    %1595 = vmatprep.subr.mxu0 0.0
    %1596 = vmatpush2.msra.mxu0 0.0
    %1597 = vmatprep.subr.mxu0 0.0
    %1598 = vmatpush2.msra.mxu0 0.0
    %1599 = vmatprep.subr.mxu0 0.0
    %1600 = vmatpush2.msra.mxu0 0.0
    %1601 = vmatprep.subr.mxu0 0.0
    %1602 = vmatpush2.msra.mxu0 0.0
    %1603 = vmatprep.subr.mxu0 0.0
    %1604 = vmatpush2.msra.mxu0 0.0
    %1605 = vmatprep.subr.mxu0 0.0
    %1606 = vmatpush2.msra.mxu0 0.0
    %1607 = vmatprep.subr.mxu0 0.0
    %1608 = vmatpush2.msra.mxu0 0.0
    %1609 = vmatprep.subr.mxu0 0.0
    %1610 = vmatpush2.msra.mxu0 0.0
    %1611 = vmatprep.subr.mxu0 0.0
    %1612 = vmatpush2.msra.mxu0 0.0
    %1613 = vmatprep.subr.mxu0 0.0
    %1614 = vmatpush2.msra.mxu0 0.0
    %1615 = vmatprep.mubr.f32.mxu0 0.0
    %1616 = vmatmul.mubr.f32.gmra.mxu0 %v1407
    %v1617 = vpop.f32.mrf.mxu0
    %v1618 = vadd.f32 0.0, %v1617
    %v1619 = vpop.f32.mrf.mxu0
    %v1620 = vadd.f32 0.0, %v1619
    %1621 = vdwg.mxu0
    %1622 = vmatprep.subr.mxu0 0.0
    %1623 = vmatpush1.msra.mxu0 0.0
    %1624 = vmatprep.subr.mxu0 0.0
    %1625 = vmatpush1.msra.mxu0 0.0
    %1626 = vmatprep.subr.mxu0 0.0
    %1627 = vmatpush1.msra.mxu0 0.0
    %1628 = vmatprep.subr.mxu0 0.0
    %1629 = vmatpush1.msra.mxu0 0.0
    %1630 = vmatprep.subr.mxu0 0.0
    %1631 = vmatpush1.msra.mxu0 0.0
    %1632 = vmatprep.subr.mxu0 0.0
    %1633 = vmatpush1.msra.mxu0 0.0
    %1634 = vmatprep.subr.mxu0 0.0
    %1635 = vmatpush1.msra.mxu0 0.0
    %1636 = vmatprep.subr.mxu0 0.0
    %1637 = vmatpush1.msra.mxu0 0.0
    %1638 = vmatprep.subr.mxu0 0.0
    %1639 = vmatpush1.msra.mxu0 0.0
    %1640 = vmatprep.subr.mxu0 0.0
    %1641 = vmatpush1.msra.mxu0 0.0
    %1642 = vmatprep.subr.mxu0 0.0
    %1643 = vmatpush1.msra.mxu0 0.0
    %1644 = vmatprep.subr.mxu0 0.0
    %1645 = vmatpush1.msra.mxu0 0.0
    %1646 = vmatprep.subr.mxu0 0.0
    %1647 = vmatpush1.msra.mxu0 0.0
    %1648 = vmatprep.subr.mxu0 0.0
    %1649 = vmatpush1.msra.mxu0 0.0
    %1650 = vmatprep.subr.mxu0 0.0
    %1651 = vmatpush1.msra.mxu0 0.0
    %1652 = vmatprep.subr.mxu0 %v1405
    %1653 = vmatpush1.msra.mxu0 %v1404
    %1654 = vmatprep.subr.mxu0 0.0
    %1655 = vmatpush2.msra.mxu0 0.0
    %1656 = vmatprep.subr.mxu0 0.0
    %1657 = vmatpush2.msra.mxu0 0.0
    %1658 = vmatprep.subr.mxu0 0.0
    %1659 = vmatpush2.msra.mxu0 0.0
    %1660 = vmatprep.subr.mxu0 0.0
    %1661 = vmatpush2.msra.mxu0 0.0
    %1662 = vmatprep.subr.mxu0 0.0
    %1663 = vmatpush2.msra.mxu0 0.0
    %1664 = vmatprep.subr.mxu0 0.0
    %1665 = vmatpush2.msra.mxu0 0.0
    %1666 = vmatprep.subr.mxu0 0.0
    %1667 = vmatpush2.msra.mxu0 0.0
    %1668 = vmatprep.subr.mxu0 0.0
    %1669 = vmatpush2.msra.mxu0 0.0
    %1670 = vmatprep.subr.mxu0 0.0
    %1671 = vmatpush2.msra.mxu0 0.0
    %1672 = vmatprep.subr.mxu0 0.0
    %1673 = vmatpush2.msra.mxu0 0.0
    %1674 = vmatprep.subr.mxu0 0.0
    %1675 = vmatpush2.msra.mxu0 0.0
    %1676 = vmatprep.subr.mxu0 0.0
    %1677 = vmatpush2.msra.mxu0 0.0
    %1678 = vmatprep.subr.mxu0 0.0
    %1679 = vmatpush2.msra.mxu0 0.0
    %1680 = vmatprep.subr.mxu0 0.0
    %1681 = vmatpush2.msra.mxu0 0.0
    %1682 = vmatprep.subr.mxu0 0.0
    %1683 = vmatpush2.msra.mxu0 0.0
    %1684 = vmatprep.subr.mxu0 0.0
    %1685 = vmatpush2.msra.mxu0 0.0
    %1686 = vmatprep.mubr.f32.mxu0 0.0
    %1687 = vmatmul.mubr.f32.gmra.mxu0 %v1407
    %v1688 = vpop.f32.mrf.mxu0
    %v1689 = vadd.f32 0.0, %v1688
    %v1690 = vpop.f32.mrf.mxu0
    %v1691 = vadd.f32 0.0, %v1690
    %1692 = vdwg.mxu0
    %v1693 = vmul.f32 %v1346, %v1476
    %v1694 = vmul.f32 %v1347, %v1478
    %v1695 = vmul.f32 %v1348, %v1547
    %v1696 = vmul.f32 %v1349, %v1549
    %v1697 = vmul.f32 %v1350, %v1618
    %v1698 = vmul.f32 %v1351, %v1620
    %v1699 = vmul.f32 %v1352, %v1689
    %v1700 = vmul.f32 %v1353, %v1691
    %v1701 = vpack.c.bf16 %v1693, %v1693
    %v1702 = vpack.c.bf16 %v1694, %v1694
    %v1703 = vpack.c.bf16 %v1695, %v1695
    %v1704 = vpack.c.bf16 %v1696, %v1696
    %v1705 = vpack.c.bf16 %v1697, %v1697
    %v1706 = vpack.c.bf16 %v1698, %v1698
    %v1707 = vpack.c.bf16 %v1699, %v1699
    %v1708 = vpack.c.bf16 %v1700, %v1700
    %v1709 = vld [vmem:[#allocation5] sm:$0xf]
    %v1710 = vld [vmem:[#allocation5 + $0x4] sm:$0xf]
    %v1711 = vld [vmem:[#allocation5 + $0x8] sm:$0xf]
    %v1712 = vld [vmem:[#allocation5 + $0xc] sm:$0xf]
    %v1713 = vld [vmem:[#allocation5 + $0x10] sm:$0xf]
    %v1714 = vld [vmem:[#allocation5 + $0x14] sm:$0xf]
    %v1715 = vld [vmem:[#allocation5 + $0x18] sm:$0xf]
    %v1716 = vld [vmem:[#allocation5 + $0x1c] sm:$0xf]
    %v1717 = vld [vmem:[#allocation5 + $0x20] sm:$0xf]
    %v1718 = vld [vmem:[#allocation5 + $0x24] sm:$0xf]
    %v1719 = vld [vmem:[#allocation5 + $0x28] sm:$0xf]
    %v1720 = vld [vmem:[#allocation5 + $0x2c] sm:$0xf]
    %v1721 = vld [vmem:[#allocation5 + $0x30] sm:$0xf]
    %v1722 = vld [vmem:[#allocation5 + $0x34] sm:$0xf]
    %v1723 = vld [vmem:[#allocation5 + $0x38] sm:$0xf]
    %v1724 = vld [vmem:[#allocation5 + $0x3c] sm:$0xf]
    %v1725 = vld [vmem:[#allocation5 + $0x40] sm:$0xf]
    %v1726 = vld [vmem:[#allocation5 + $0x44] sm:$0xf]
    %v1727 = vld [vmem:[#allocation5 + $0x48] sm:$0xf]
    %v1728 = vld [vmem:[#allocation5 + $0x4c] sm:$0xf]
    %v1729 = vld [vmem:[#allocation5 + $0x50] sm:$0xf]
    %v1730 = vld [vmem:[#allocation5 + $0x54] sm:$0xf]
    %v1731 = vld [vmem:[#allocation5 + $0x58] sm:$0xf]
    %v1732 = vld [vmem:[#allocation5 + $0x5c] sm:$0xf]
    %v1733 = vld [vmem:[#allocation5 + $0x60] sm:$0xf]
    %v1734 = vld [vmem:[#allocation5 + $0x64] sm:$0xf]
    %v1735 = vld [vmem:[#allocation5 + $0x68] sm:$0xf]
    %v1736 = vld [vmem:[#allocation5 + $0x6c] sm:$0xf]
    %v1737 = vld [vmem:[#allocation5 + $0x70] sm:$0xf]
    %v1738 = vld [vmem:[#allocation5 + $0x74] sm:$0xf]
    %v1739 = vld [vmem:[#allocation5 + $0x78] sm:$0xf]
    %v1740 = vld [vmem:[#allocation5 + $0x7c] sm:$0xf]
    %v1741 = vld [vmem:[#allocation5 + $0x80] sm:$0xf]
    %v1742 = vld [vmem:[#allocation5 + $0x84] sm:$0xf]
    %v1743 = vld [vmem:[#allocation5 + $0x88] sm:$0xf]
    %v1744 = vld [vmem:[#allocation5 + $0x8c] sm:$0xf]
    %v1745 = vld [vmem:[#allocation5 + $0x90] sm:$0xf]
    %v1746 = vld [vmem:[#allocation5 + $0x94] sm:$0xf]
    %v1747 = vld [vmem:[#allocation5 + $0x98] sm:$0xf]
    %v1748 = vld [vmem:[#allocation5 + $0x9c] sm:$0xf]
    %v1749 = vld [vmem:[#allocation5 + $0xa0] sm:$0xf]
    %v1750 = vld [vmem:[#allocation5 + $0xa4] sm:$0xf]
    %v1751 = vld [vmem:[#allocation5 + $0xa8] sm:$0xf]
    %v1752 = vld [vmem:[#allocation5 + $0xac] sm:$0xf]
    %v1753 = vld [vmem:[#allocation5 + $0xb0] sm:$0xf]
    %v1754 = vld [vmem:[#allocation5 + $0xb4] sm:$0xf]
    %v1755 = vld [vmem:[#allocation5 + $0xb8] sm:$0xf]
    %v1756 = vld [vmem:[#allocation5 + $0xbc] sm:$0xf]
    %v1757 = vld [vmem:[#allocation5 + $0xc0] sm:$0xf]
    %v1758 = vld [vmem:[#allocation5 + $0xc4] sm:$0xf]
    %v1759 = vld [vmem:[#allocation5 + $0xc8] sm:$0xf]
    %v1760 = vld [vmem:[#allocation5 + $0xcc] sm:$0xf]
    %v1761 = vld [vmem:[#allocation5 + $0xd0] sm:$0xf]
    %v1762 = vld [vmem:[#allocation5 + $0xd4] sm:$0xf]
    %v1763 = vld [vmem:[#allocation5 + $0xd8] sm:$0xf]
    %v1764 = vld [vmem:[#allocation5 + $0xdc] sm:$0xf]
    %v1765 = vld [vmem:[#allocation5 + $0xe0] sm:$0xf]
    %v1766 = vld [vmem:[#allocation5 + $0xe4] sm:$0xf]
    %v1767 = vld [vmem:[#allocation5 + $0xe8] sm:$0xf]
    %v1768 = vld [vmem:[#allocation5 + $0xec] sm:$0xf]
    %v1769 = vld [vmem:[#allocation5 + $0xf0] sm:$0xf]
    %v1770 = vld [vmem:[#allocation5 + $0xf4] sm:$0xf]
    %v1771 = vld [vmem:[#allocation5 + $0xf8] sm:$0xf]
    %v1772 = vld [vmem:[#allocation5 + $0xfc] sm:$0xf]
    %v1773 = vld [vmem:[#allocation5 + $0x100] sm:$0xf]
    %v1774 = vld [vmem:[#allocation5 + $0x104] sm:$0xf]
    %v1775 = vld [vmem:[#allocation5 + $0x108] sm:$0xf]
    %v1776 = vld [vmem:[#allocation5 + $0x10c] sm:$0xf]
    %v1777 = vld [vmem:[#allocation5 + $0x110] sm:$0xf]
    %v1778 = vld [vmem:[#allocation5 + $0x114] sm:$0xf]
    %v1779 = vld [vmem:[#allocation5 + $0x118] sm:$0xf]
    %v1780 = vld [vmem:[#allocation5 + $0x11c] sm:$0xf]
    %v1781 = vld [vmem:[#allocation5 + $0x120] sm:$0xf]
    %v1782 = vld [vmem:[#allocation5 + $0x124] sm:$0xf]
    %v1783 = vld [vmem:[#allocation5 + $0x128] sm:$0xf]
    %v1784 = vld [vmem:[#allocation5 + $0x12c] sm:$0xf]
    %v1785 = vld [vmem:[#allocation5 + $0x130] sm:$0xf]
    %v1786 = vld [vmem:[#allocation5 + $0x134] sm:$0xf]
    %v1787 = vld [vmem:[#allocation5 + $0x138] sm:$0xf]
    %v1788 = vld [vmem:[#allocation5 + $0x13c] sm:$0xf]
    %v1789 = vld [vmem:[#allocation5 + $0x140] sm:$0xf]
    %v1790 = vld [vmem:[#allocation5 + $0x144] sm:$0xf]
    %v1791 = vld [vmem:[#allocation5 + $0x148] sm:$0xf]
    %v1792 = vld [vmem:[#allocation5 + $0x14c] sm:$0xf]
    %v1793 = vld [vmem:[#allocation5 + $0x150] sm:$0xf]
    %v1794 = vld [vmem:[#allocation5 + $0x154] sm:$0xf]
    %v1795 = vld [vmem:[#allocation5 + $0x158] sm:$0xf]
    %v1796 = vld [vmem:[#allocation5 + $0x15c] sm:$0xf]
    %v1797 = vld [vmem:[#allocation5 + $0x160] sm:$0xf]
    %v1798 = vld [vmem:[#allocation5 + $0x164] sm:$0xf]
    %v1799 = vld [vmem:[#allocation5 + $0x168] sm:$0xf]
    %v1800 = vld [vmem:[#allocation5 + $0x16c] sm:$0xf]
    %v1801 = vld [vmem:[#allocation5 + $0x170] sm:$0xf]
    %v1802 = vld [vmem:[#allocation5 + $0x174] sm:$0xf]
    %v1803 = vld [vmem:[#allocation5 + $0x178] sm:$0xf]
    %v1804 = vld [vmem:[#allocation5 + $0x17c] sm:$0xf]
    %v1805 = vld [vmem:[#allocation5 + $0x180] sm:$0xf]
    %v1806 = vld [vmem:[#allocation5 + $0x184] sm:$0xf]
    %v1807 = vld [vmem:[#allocation5 + $0x188] sm:$0xf]
    %v1808 = vld [vmem:[#allocation5 + $0x18c] sm:$0xf]
    %v1809 = vld [vmem:[#allocation5 + $0x190] sm:$0xf]
    %v1810 = vld [vmem:[#allocation5 + $0x194] sm:$0xf]
    %v1811 = vld [vmem:[#allocation5 + $0x198] sm:$0xf]
    %v1812 = vld [vmem:[#allocation5 + $0x19c] sm:$0xf]
    %v1813 = vld [vmem:[#allocation5 + $0x1a0] sm:$0xf]
    %v1814 = vld [vmem:[#allocation5 + $0x1a4] sm:$0xf]
    %v1815 = vld [vmem:[#allocation5 + $0x1a8] sm:$0xf]
    %v1816 = vld [vmem:[#allocation5 + $0x1ac] sm:$0xf]
    %v1817 = vld [vmem:[#allocation5 + $0x1b0] sm:$0xf]
    %v1818 = vld [vmem:[#allocation5 + $0x1b4] sm:$0xf]
    %v1819 = vld [vmem:[#allocation5 + $0x1b8] sm:$0xf]
    %v1820 = vld [vmem:[#allocation5 + $0x1bc] sm:$0xf]
    %v1821 = vld [vmem:[#allocation5 + $0x1c0] sm:$0xf]
    %v1822 = vld [vmem:[#allocation5 + $0x1c4] sm:$0xf]
    %v1823 = vld [vmem:[#allocation5 + $0x1c8] sm:$0xf]
    %v1824 = vld [vmem:[#allocation5 + $0x1cc] sm:$0xf]
    %v1825 = vld [vmem:[#allocation5 + $0x1d0] sm:$0xf]
    %v1826 = vld [vmem:[#allocation5 + $0x1d4] sm:$0xf]
    %v1827 = vld [vmem:[#allocation5 + $0x1d8] sm:$0xf]
    %v1828 = vld [vmem:[#allocation5 + $0x1dc] sm:$0xf]
    %v1829 = vld [vmem:[#allocation5 + $0x1e0] sm:$0xf]
    %v1830 = vld [vmem:[#allocation5 + $0x1e4] sm:$0xf]
    %v1831 = vld [vmem:[#allocation5 + $0x1e8] sm:$0xf]
    %v1832 = vld [vmem:[#allocation5 + $0x1ec] sm:$0xf]
    %v1833 = vld [vmem:[#allocation5 + $0x1f0] sm:$0xf]
    %v1834 = vld [vmem:[#allocation5 + $0x1f4] sm:$0xf]
    %v1835 = vld [vmem:[#allocation5 + $0x1f8] sm:$0xf]
    %v1836 = vld [vmem:[#allocation5 + $0x1fc] sm:$0xf]
    %v1965 = vunpack.c.l.b16 %v1709
    %v1966 = vunpack.c.l.b16 %v1710
    %v1967 = vunpack.c.l.b16 %v1711
    %v1968 = vunpack.c.l.b16 %v1712
    %v1969 = vunpack.c.l.b16 %v1713
    %v1970 = vunpack.c.l.b16 %v1714
    %v1971 = vunpack.c.l.b16 %v1715
    %v1972 = vunpack.c.l.b16 %v1716
    %v1973 = vunpack.c.l.b16 %v1717
    %v1974 = vunpack.c.l.b16 %v1718
    %v1975 = vunpack.c.l.b16 %v1719
    %v1976 = vunpack.c.l.b16 %v1720
    %v1977 = vunpack.c.l.b16 %v1721
    %v1978 = vunpack.c.l.b16 %v1722
    %v1979 = vunpack.c.l.b16 %v1723
    %v1980 = vunpack.c.l.b16 %v1724
    %v1981 = vunpack.c.l.b16 %v1725
    %v1982 = vunpack.c.l.b16 %v1726
    %v1983 = vunpack.c.l.b16 %v1727
    %v1984 = vunpack.c.l.b16 %v1728
    %v1985 = vunpack.c.l.b16 %v1729
    %v1986 = vunpack.c.l.b16 %v1730
    %v1987 = vunpack.c.l.b16 %v1731
    %v1988 = vunpack.c.l.b16 %v1732
    %v1989 = vunpack.c.l.b16 %v1733
    %v1990 = vunpack.c.l.b16 %v1734
    %v1991 = vunpack.c.l.b16 %v1735
    %v1992 = vunpack.c.l.b16 %v1736
    %v1993 = vunpack.c.l.b16 %v1737
    %v1994 = vunpack.c.l.b16 %v1738
    %v1995 = vunpack.c.l.b16 %v1739
    %v1996 = vunpack.c.l.b16 %v1740
    %v1997 = vunpack.c.l.b16 %v1741
    %v1998 = vunpack.c.l.b16 %v1742
    %v1999 = vunpack.c.l.b16 %v1743
    %v2000 = vunpack.c.l.b16 %v1744
    %v2001 = vunpack.c.l.b16 %v1745
    %v2002 = vunpack.c.l.b16 %v1746
    %v2003 = vunpack.c.l.b16 %v1747
    %v2004 = vunpack.c.l.b16 %v1748
    %v2005 = vunpack.c.l.b16 %v1749
    %v2006 = vunpack.c.l.b16 %v1750
    %v2007 = vunpack.c.l.b16 %v1751
    %v2008 = vunpack.c.l.b16 %v1752
    %v2009 = vunpack.c.l.b16 %v1753
    %v2010 = vunpack.c.l.b16 %v1754
    %v2011 = vunpack.c.l.b16 %v1755
    %v2012 = vunpack.c.l.b16 %v1756
    %v2013 = vunpack.c.l.b16 %v1757
    %v2014 = vunpack.c.l.b16 %v1758
    %v2015 = vunpack.c.l.b16 %v1759
    %v2016 = vunpack.c.l.b16 %v1760
    %v2017 = vunpack.c.l.b16 %v1761
    %v2018 = vunpack.c.l.b16 %v1762
    %v2019 = vunpack.c.l.b16 %v1763
    %v2020 = vunpack.c.l.b16 %v1764
    %v2021 = vunpack.c.l.b16 %v1765
    %v2022 = vunpack.c.l.b16 %v1766
    %v2023 = vunpack.c.l.b16 %v1767
    %v2024 = vunpack.c.l.b16 %v1768
    %v2025 = vunpack.c.l.b16 %v1769
    %v2026 = vunpack.c.l.b16 %v1770
    %v2027 = vunpack.c.l.b16 %v1771
    %v2028 = vunpack.c.l.b16 %v1772
    %v2029 = vunpack.c.l.b16 %v1773
    %v2030 = vunpack.c.l.b16 %v1774
    %v2031 = vunpack.c.l.b16 %v1775
    %v2032 = vunpack.c.l.b16 %v1776
    %v2033 = vunpack.c.l.b16 %v1777
    %v2034 = vunpack.c.l.b16 %v1778
    %v2035 = vunpack.c.l.b16 %v1779
    %v2036 = vunpack.c.l.b16 %v1780
    %v2037 = vunpack.c.l.b16 %v1781
    %v2038 = vunpack.c.l.b16 %v1782
    %v2039 = vunpack.c.l.b16 %v1783
    %v2040 = vunpack.c.l.b16 %v1784
    %v2041 = vunpack.c.l.b16 %v1785
    %v2042 = vunpack.c.l.b16 %v1786
    %v2043 = vunpack.c.l.b16 %v1787
    %v2044 = vunpack.c.l.b16 %v1788
    %v2045 = vunpack.c.l.b16 %v1789
    %v2046 = vunpack.c.l.b16 %v1790
    %v2047 = vunpack.c.l.b16 %v1791
    %v2048 = vunpack.c.l.b16 %v1792
    %v2049 = vunpack.c.l.b16 %v1793
    %v2050 = vunpack.c.l.b16 %v1794
    %v2051 = vunpack.c.l.b16 %v1795
    %v2052 = vunpack.c.l.b16 %v1796
    %v2053 = vunpack.c.l.b16 %v1797
    %v2054 = vunpack.c.l.b16 %v1798
    %v2055 = vunpack.c.l.b16 %v1799
    %v2056 = vunpack.c.l.b16 %v1800
    %v2057 = vunpack.c.l.b16 %v1801
    %v2058 = vunpack.c.l.b16 %v1802
    %v2059 = vunpack.c.l.b16 %v1803
    %v2060 = vunpack.c.l.b16 %v1804
    %v2061 = vunpack.c.l.b16 %v1805
    %v2062 = vunpack.c.l.b16 %v1806
    %v2063 = vunpack.c.l.b16 %v1807
    %v2064 = vunpack.c.l.b16 %v1808
    %v2065 = vunpack.c.l.b16 %v1809
    %v2066 = vunpack.c.l.b16 %v1810
    %v2067 = vunpack.c.l.b16 %v1811
    %v2068 = vunpack.c.l.b16 %v1812
    %v2069 = vunpack.c.l.b16 %v1813
    %v2070 = vunpack.c.l.b16 %v1814
    %v2071 = vunpack.c.l.b16 %v1815
    %v2072 = vunpack.c.l.b16 %v1816
    %v2073 = vunpack.c.l.b16 %v1817
    %v2074 = vunpack.c.l.b16 %v1818
    %v2075 = vunpack.c.l.b16 %v1819
    %v2076 = vunpack.c.l.b16 %v1820
    %v2077 = vunpack.c.l.b16 %v1821
    %v2078 = vunpack.c.l.b16 %v1822
    %v2079 = vunpack.c.l.b16 %v1823
    %v2080 = vunpack.c.l.b16 %v1824
    %v2081 = vunpack.c.l.b16 %v1825
    %v2082 = vunpack.c.l.b16 %v1826
    %v2083 = vunpack.c.l.b16 %v1827
    %v2084 = vunpack.c.l.b16 %v1828
    %v2085 = vunpack.c.l.b16 %v1829
    %v2086 = vunpack.c.l.b16 %v1830
    %v2087 = vunpack.c.l.b16 %v1831
    %v2088 = vunpack.c.l.b16 %v1832
    %v2089 = vunpack.c.l.b16 %v1833
    %v2090 = vunpack.c.l.b16 %v1834
    %v2091 = vunpack.c.l.b16 %v1835
    %v2092 = vunpack.c.l.b16 %v1836
    %v2093 = vpack.c.b16 %v1966, %v1965
    %v2094 = vpack.c.b16 %v1968, %v1967
    %v2095 = vpack.c.b16 %v1970, %v1969
    %v2096 = vpack.c.b16 %v1972, %v1971
    %v2097 = vpack.c.b16 %v1974, %v1973
    %v2098 = vpack.c.b16 %v1976, %v1975
    %v2099 = vpack.c.b16 %v1978, %v1977
    %v2100 = vpack.c.b16 %v1980, %v1979
    %v2101 = vpack.c.b16 %v1982, %v1981
    %v2102 = vpack.c.b16 %v1984, %v1983
    %v2103 = vpack.c.b16 %v1986, %v1985
    %v2104 = vpack.c.b16 %v1988, %v1987
    %v2105 = vpack.c.b16 %v1990, %v1989
    %v2106 = vpack.c.b16 %v1992, %v1991
    %v2107 = vpack.c.b16 %v1994, %v1993
    %v2108 = vpack.c.b16 %v1996, %v1995
    %v2109 = vpack.c.b16 %v1998, %v1997
    %v2110 = vpack.c.b16 %v2000, %v1999
    %v2111 = vpack.c.b16 %v2002, %v2001
    %v2112 = vpack.c.b16 %v2004, %v2003
    %v2113 = vpack.c.b16 %v2006, %v2005
    %v2114 = vpack.c.b16 %v2008, %v2007
    %v2115 = vpack.c.b16 %v2010, %v2009
    %v2116 = vpack.c.b16 %v2012, %v2011
    %v2117 = vpack.c.b16 %v2014, %v2013
    %v2118 = vpack.c.b16 %v2016, %v2015
    %v2119 = vpack.c.b16 %v2018, %v2017
    %v2120 = vpack.c.b16 %v2020, %v2019
    %v2121 = vpack.c.b16 %v2022, %v2021
    %v2122 = vpack.c.b16 %v2024, %v2023
    %v2123 = vpack.c.b16 %v2026, %v2025
    %v2124 = vpack.c.b16 %v2028, %v2027
    %v2125 = vpack.c.b16 %v2030, %v2029
    %v2126 = vpack.c.b16 %v2032, %v2031
    %v2127 = vpack.c.b16 %v2034, %v2033
    %v2128 = vpack.c.b16 %v2036, %v2035
    %v2129 = vpack.c.b16 %v2038, %v2037
    %v2130 = vpack.c.b16 %v2040, %v2039
    %v2131 = vpack.c.b16 %v2042, %v2041
    %v2132 = vpack.c.b16 %v2044, %v2043
    %v2133 = vpack.c.b16 %v2046, %v2045
    %v2134 = vpack.c.b16 %v2048, %v2047
    %v2135 = vpack.c.b16 %v2050, %v2049
    %v2136 = vpack.c.b16 %v2052, %v2051
    %v2137 = vpack.c.b16 %v2054, %v2053
    %v2138 = vpack.c.b16 %v2056, %v2055
    %v2139 = vpack.c.b16 %v2058, %v2057
    %v2140 = vpack.c.b16 %v2060, %v2059
    %v2141 = vpack.c.b16 %v2062, %v2061
    %v2142 = vpack.c.b16 %v2064, %v2063
    %v2143 = vpack.c.b16 %v2066, %v2065
    %v2144 = vpack.c.b16 %v2068, %v2067
    %v2145 = vpack.c.b16 %v2070, %v2069
    %v2146 = vpack.c.b16 %v2072, %v2071
    %v2147 = vpack.c.b16 %v2074, %v2073
    %v2148 = vpack.c.b16 %v2076, %v2075
    %v2149 = vpack.c.b16 %v2078, %v2077
    %v2150 = vpack.c.b16 %v2080, %v2079
    %v2151 = vpack.c.b16 %v2082, %v2081
    %v2152 = vpack.c.b16 %v2084, %v2083
    %v2153 = vpack.c.b16 %v2086, %v2085
    %v2154 = vpack.c.b16 %v2088, %v2087
    %v2155 = vpack.c.b16 %v2090, %v2089
    %v2156 = vpack.c.b16 %v2092, %v2091
    %2221 = vmatprep.subr.bf16.mxu0 0
    %2222 = vmatpush1.bf16.msra.mxu0 %v2100
    %2223 = vmatprep.subr.bf16.mxu0 0
    %2224 = vmatpush1.bf16.msra.mxu0 %v2099
    %2225 = vmatprep.subr.bf16.mxu0 0
    %2226 = vmatpush1.bf16.msra.mxu0 %v2098
    %2227 = vmatprep.subr.bf16.mxu0 0
    %2228 = vmatpush1.bf16.msra.mxu0 %v2097
    %2229 = vmatprep.subr.bf16.mxu0 0
    %2230 = vmatpush1.bf16.msra.mxu0 %v2096
    %2231 = vmatprep.subr.bf16.mxu0 0
    %2232 = vmatpush1.bf16.msra.mxu0 %v2095
    %2233 = vmatprep.subr.bf16.mxu0 0
    %2234 = vmatpush1.bf16.msra.mxu0 %v2094
    %2235 = vmatprep.subr.bf16.mxu0 0
    %2236 = vmatpush1.bf16.msra.mxu0 %v2093
    %2237 = vmatprep.subr.bf16.mxu0 0
    %2238 = vmatpush2.bf16.msra.mxu0 %v2108
    %2239 = vmatprep.subr.bf16.mxu0 0
    %2240 = vmatpush2.bf16.msra.mxu0 %v2107
    %2241 = vmatprep.subr.bf16.mxu0 0
    %2242 = vmatpush2.bf16.msra.mxu0 %v2106
    %2243 = vmatprep.subr.bf16.mxu0 0
    %2244 = vmatpush2.bf16.msra.mxu0 %v2105
    %2245 = vmatprep.subr.bf16.mxu0 0
    %2246 = vmatpush2.bf16.msra.mxu0 %v2104
    %2247 = vmatprep.subr.bf16.mxu0 0
    %2248 = vmatpush2.bf16.msra.mxu0 %v2103
    %2249 = vmatprep.subr.bf16.mxu0 0
    %2250 = vmatpush2.bf16.msra.mxu0 %v2102
    %2251 = vmatprep.subr.bf16.mxu0 0
    %2252 = vmatpush2.bf16.msra.mxu0 %v2101
    %2253 = vmatprep.mubr.bf16.mxu0 %v1702
    %2254 = vmatmul.mubr.bf16.gmra.mxu0 %v1701
    %v2255 = vpop.f32.mrf.mxu0
    %v2256 = vadd.f32 0.0, %v2255
    %v2257 = vpop.f32.mrf.mxu0
    %v2258 = vpop.f32.mrf.mxu0
    %v2259 = vpop.f32.mrf.mxu0
    %2260 = vdwg.mxu0
    %2261 = vmatprep.subr.bf16.mxu0 0
    %2262 = vmatpush1.bf16.msra.mxu0 %v2116
    %2263 = vmatprep.subr.bf16.mxu0 0
    %2264 = vmatpush1.bf16.msra.mxu0 %v2115
    %2265 = vmatprep.subr.bf16.mxu0 0
    %2266 = vmatpush1.bf16.msra.mxu0 %v2114
    %2267 = vmatprep.subr.bf16.mxu0 0
    %2268 = vmatpush1.bf16.msra.mxu0 %v2113
    %2269 = vmatprep.subr.bf16.mxu0 0
    %2270 = vmatpush1.bf16.msra.mxu0 %v2112
    %2271 = vmatprep.subr.bf16.mxu0 0
    %2272 = vmatpush1.bf16.msra.mxu0 %v2111
    %2273 = vmatprep.subr.bf16.mxu0 0
    %2274 = vmatpush1.bf16.msra.mxu0 %v2110
    %2275 = vmatprep.subr.bf16.mxu0 0
    %2276 = vmatpush1.bf16.msra.mxu0 %v2109
    %2277 = vmatprep.subr.bf16.mxu0 0
    %2278 = vmatpush2.bf16.msra.mxu0 %v2124
    %2279 = vmatprep.subr.bf16.mxu0 0
    %2280 = vmatpush2.bf16.msra.mxu0 %v2123
    %2281 = vmatprep.subr.bf16.mxu0 0
    %2282 = vmatpush2.bf16.msra.mxu0 %v2122
    %2283 = vmatprep.subr.bf16.mxu0 0
    %2284 = vmatpush2.bf16.msra.mxu0 %v2121
    %2285 = vmatprep.subr.bf16.mxu0 0
    %2286 = vmatpush2.bf16.msra.mxu0 %v2120
    %2287 = vmatprep.subr.bf16.mxu0 0
    %2288 = vmatpush2.bf16.msra.mxu0 %v2119
    %2289 = vmatprep.subr.bf16.mxu0 0
    %2290 = vmatpush2.bf16.msra.mxu0 %v2118
    %2291 = vmatprep.subr.bf16.mxu0 0
    %2292 = vmatpush2.bf16.msra.mxu0 %v2117
    %2293 = vmatprep.mubr.bf16.mxu0 %v1704
    %2294 = vmatmul.mubr.bf16.gmra.mxu0 %v1703
    %v2295 = vpop.f32.mrf.mxu0
    %v2296 = vadd.f32 %v2256, %v2295
    %v2297 = vpop.f32.mrf.mxu0
    %v2298 = vpop.f32.mrf.mxu0
    %v2299 = vpop.f32.mrf.mxu0
    %2300 = vdwg.mxu0
    %2301 = vmatprep.subr.bf16.mxu0 0
    %2302 = vmatpush1.bf16.msra.mxu0 %v2132
    %2303 = vmatprep.subr.bf16.mxu0 0
    %2304 = vmatpush1.bf16.msra.mxu0 %v2131
    %2305 = vmatprep.subr.bf16.mxu0 0
    %2306 = vmatpush1.bf16.msra.mxu0 %v2130
    %2307 = vmatprep.subr.bf16.mxu0 0
    %2308 = vmatpush1.bf16.msra.mxu0 %v2129
    %2309 = vmatprep.subr.bf16.mxu0 0
    %2310 = vmatpush1.bf16.msra.mxu0 %v2128
    %2311 = vmatprep.subr.bf16.mxu0 0
    %2312 = vmatpush1.bf16.msra.mxu0 %v2127
    %2313 = vmatprep.subr.bf16.mxu0 0
    %2314 = vmatpush1.bf16.msra.mxu0 %v2126
    %2315 = vmatprep.subr.bf16.mxu0 0
    %2316 = vmatpush1.bf16.msra.mxu0 %v2125
    %2317 = vmatprep.subr.bf16.mxu0 0
    %2318 = vmatpush2.bf16.msra.mxu0 %v2140
    %2319 = vmatprep.subr.bf16.mxu0 0
    %2320 = vmatpush2.bf16.msra.mxu0 %v2139
    %2321 = vmatprep.subr.bf16.mxu0 0
    %2322 = vmatpush2.bf16.msra.mxu0 %v2138
    %2323 = vmatprep.subr.bf16.mxu0 0
    %2324 = vmatpush2.bf16.msra.mxu0 %v2137
    %2325 = vmatprep.subr.bf16.mxu0 0
    %2326 = vmatpush2.bf16.msra.mxu0 %v2136
    %2327 = vmatprep.subr.bf16.mxu0 0
    %2328 = vmatpush2.bf16.msra.mxu0 %v2135
    %2329 = vmatprep.subr.bf16.mxu0 0
    %2330 = vmatpush2.bf16.msra.mxu0 %v2134
    %2331 = vmatprep.subr.bf16.mxu0 0
    %2332 = vmatpush2.bf16.msra.mxu0 %v2133
    %2333 = vmatprep.mubr.bf16.mxu0 %v1706
    %2334 = vmatmul.mubr.bf16.gmra.mxu0 %v1705
    %v2335 = vpop.f32.mrf.mxu0
    %v2336 = vadd.f32 %v2296, %v2335
    %v2337 = vpop.f32.mrf.mxu0
    %v2338 = vpop.f32.mrf.mxu0
    %v2339 = vpop.f32.mrf.mxu0
    %2340 = vdwg.mxu0
    %2341 = vmatprep.subr.bf16.mxu0 0
    %2342 = vmatpush1.bf16.msra.mxu0 %v2148
    %2343 = vmatprep.subr.bf16.mxu0 0
    %2344 = vmatpush1.bf16.msra.mxu0 %v2147
    %2345 = vmatprep.subr.bf16.mxu0 0
    %2346 = vmatpush1.bf16.msra.mxu0 %v2146
    %2347 = vmatprep.subr.bf16.mxu0 0
    %2348 = vmatpush1.bf16.msra.mxu0 %v2145
    %2349 = vmatprep.subr.bf16.mxu0 0
    %2350 = vmatpush1.bf16.msra.mxu0 %v2144
    %2351 = vmatprep.subr.bf16.mxu0 0
    %2352 = vmatpush1.bf16.msra.mxu0 %v2143
    %2353 = vmatprep.subr.bf16.mxu0 0
    %2354 = vmatpush1.bf16.msra.mxu0 %v2142
    %2355 = vmatprep.subr.bf16.mxu0 0
    %2356 = vmatpush1.bf16.msra.mxu0 %v2141
    %2357 = vmatprep.subr.bf16.mxu0 0
    %2358 = vmatpush2.bf16.msra.mxu0 %v2156
    %2359 = vmatprep.subr.bf16.mxu0 0
    %2360 = vmatpush2.bf16.msra.mxu0 %v2155
    %2361 = vmatprep.subr.bf16.mxu0 0
    %2362 = vmatpush2.bf16.msra.mxu0 %v2154
    %2363 = vmatprep.subr.bf16.mxu0 0
    %2364 = vmatpush2.bf16.msra.mxu0 %v2153
    %2365 = vmatprep.subr.bf16.mxu0 0
    %2366 = vmatpush2.bf16.msra.mxu0 %v2152
    %2367 = vmatprep.subr.bf16.mxu0 0
    %2368 = vmatpush2.bf16.msra.mxu0 %v2151
    %2369 = vmatprep.subr.bf16.mxu0 0
    %2370 = vmatpush2.bf16.msra.mxu0 %v2150
    %2371 = vmatprep.subr.bf16.mxu0 0
    %2372 = vmatpush2.bf16.msra.mxu0 %v2149
    %2373 = vmatprep.mubr.bf16.mxu0 %v1708
    %2374 = vmatmul.mubr.bf16.gmra.mxu0 %v1707
    %v2375 = vpop.f32.mrf.mxu0
    %v2376 = vadd.f32 %v2336, %v2375
    %v2377 = vpop.f32.mrf.mxu0
    %v2378 = vpop.f32.mrf.mxu0
    %v2379 = vpop.f32.mrf.mxu0
    %2380 = vdwg.mxu0
    %2381 = vst [vmem:[#allocation7] sm:$0xff] %v2376
    // Predicated region
    $region26: #{qwen3_moe_sparse_moe_block.1} parent=1 // pred_check
      _
    $region27: #{qwen3_moe_sparse_moe_block.1} parent=1 // pred_check_branch
      %2383 = sbr.rel (0) target = $region29
    $region28: #{qwen3_moe_sparse_moe_block.1} parent=1 // pred_region
      %s2385 = ssub.s32 128, 128
      %2386 = vsyncadd [#allocation4], %s2385
      %s2388 = sshll.u32 [#allocation7], 4
      %s2389 = int_to_ptr.vmem [resolvable:$true] %s2388
      %2391 = dma.vmem_to_hbm [thread:$0]  %s2389, 128, %s4, [#allocation4]
    $region29: #{qwen3_moe_sparse_moe_block.1} parent=1 // pred_fallthru
      _
    // Predicated region
    $region30: #{qwen3_moe_sparse_moe_block.1} parent=1 // pred_check
      _
    $region31: #{qwen3_moe_sparse_moe_block.1} parent=1 // pred_check_branch
      %2393 = sbr.rel (0) target = $region33
    $region32: #{qwen3_moe_sparse_moe_block.1} parent=1 // pred_region
      %2394 = dma.done [#allocation4], 128
    $region33: #{qwen3_moe_sparse_moe_block.1} parent=1 // pred_fallthru
      _
    %2395 = vsyncpa [#allocation3], 1
    %2396 = vsyncpa [#allocation6], 1
    %2397 = vsyncpa [#allocation4], 1

</llo_original>
